<compile_context>
chip_gen: v7x
topology: tpu7x:2x2x1
jax: 0.10.0
libtpu: 0.0.40
codegen_flags: <defaults>
</compile_context>

<pallas_src>
import functools

import jax
import jax.numpy as jnp
from jax.experimental import pallas as pl
from jax.experimental.pallas import tpu as pltpu


LANE = 128


def _round_up(a, b):
    return (a + b - 1) // b * b


def class_mlp_kernel(x_ref, w_in_ref, b_in_ref, w_hid_ref, b_hid_ref,
                     w_out_ref, b_out_ref, o_ref):
    # Input layer + ReLU.  x / weights are bf16, accumulation + bias in f32.
    h = jnp.dot(x_ref[...], w_in_ref[...],
                preferred_element_type=jnp.float32) + b_in_ref[...]
    h = jnp.maximum(h, 0.0)

    # Extra hidden layers (num_hidden_layers - 1), static unrolled loop.
    n_extra = w_hid_ref.shape[0]
    for i in range(n_extra):
        h = jnp.dot(h.astype(jnp.bfloat16), w_hid_ref[i],
                    preferred_element_type=jnp.float32) + b_hid_ref[i]
        h = jnp.maximum(h, 0.0)

    # Output layer + softmax over the (padded, lane-dense) feature axis.
    # Padded columns have bias -1e9 -> exp underflows to 0, so this equals the
    # softmax over the real n_output columns.
    logits = jnp.dot(h.astype(jnp.bfloat16), w_out_ref[...],
                     preferred_element_type=jnp.float32) + b_out_ref[...]
    m = jnp.max(logits, axis=-1, keepdims=True)
    e = jnp.exp(logits - m)
    denom = jnp.sum(e, axis=-1, keepdims=True)
    o_ref[...] = (e * pl.reciprocal(denom, approx=True)).astype(o_ref.dtype)


def pad_params(w_in, b_in, w_hid, b_hid, w_out, b_out):
    """One-time padding to lane-friendly sizes + bf16 cast of MXU operands."""
    F, H = w_in.shape
    O = w_out.shape[1]
    n_extra = w_hid.shape[0]
    assert n_extra >= 1, "num_hidden_layers must be >= 2 for this kernel"
    Fp, Hp, Op = _round_up(F, LANE), _round_up(H, LANE), _round_up(O, LANE)

    bf = jnp.bfloat16
    w_in_p = jnp.zeros((Fp, Hp), bf).at[:F, :H].set(w_in.astype(bf))
    b_in_p = jnp.zeros((1, Hp), jnp.float32).at[:, :H].set(b_in)
    w_hid_p = jnp.zeros((n_extra, Hp, Hp), bf).at[:, :H, :H].set(w_hid.astype(bf))
    b_hid_p = jnp.zeros((n_extra, 1, Hp), jnp.float32).at[:, :, :H].set(b_hid)
    w_out_p = jnp.zeros((Hp, Op), bf).at[:H, :O].set(w_out.astype(bf))
    # Huge negative bias on padded output columns so the padded softmax is exact.
    b_out_p = jnp.full((1, Op), -1e9, jnp.float32).at[:, :O].set(b_out)
    return w_in_p, b_in_p, w_hid_p, b_hid_p, w_out_p, b_out_p


@functools.partial(jax.jit, static_argnames=("n_feature", "n_output", "tile_rows"))
def class_mlp_forward(x, padded_params, *, n_feature, n_output, tile_rows=512):
    w_in, b_in, w_hid, b_hid, w_out, b_out = padded_params
    B = x.shape[0]
    Fp = w_in.shape[0]
    Op = w_out.shape[1]

    # Batch tile: as large as possible (<= tile_rows), multiple of 8 sublanes.
    B8 = _round_up(max(B, 8), 8)
    TB = min(tile_rows, B8)
    Bp = _round_up(B, TB)

    # Pad batch rows + feature lanes; stream x in bf16 (halves HBM bytes).
    xp = jnp.zeros((Bp, Fp), jnp.bfloat16).at[:B, :n_feature].set(
        x.astype(jnp.bfloat16))

    const2 = lambda i: (0, 0)
    const3 = lambda i: (0, 0, 0)

    out = pl.pallas_call(
        class_mlp_kernel,
        out_shape=jax.ShapeDtypeStruct((Bp, Op), jnp.float32),
        grid=(Bp // TB,),
        in_specs=[
            pl.BlockSpec((TB, Fp), lambda i: (i, 0)),   # x: streamed per tile
            pl.BlockSpec(w_in.shape, const2),           # weights: VMEM-resident
            pl.BlockSpec(b_in.shape, const2),
            pl.BlockSpec(w_hid.shape, const3),
            pl.BlockSpec(b_hid.shape, const3),
            pl.BlockSpec(w_out.shape, const2),
            pl.BlockSpec(b_out.shape, const2),
        ],
        out_specs=pl.BlockSpec((TB, Op), lambda i: (i, 0)),
        compiler_params=pltpu.CompilerParams(
            dimension_semantics=("parallel",)),
    )(xp, w_in, b_in, w_hid, b_hid, w_out, b_out)

    return out[:B, :n_output]


def init_params(key, n_feature, n_hidden, n_output, num_hidden_layers):
    """Deterministic synthetic parameters (PyTorch Linear shapes, pre-transposed)."""
    ks = jax.random.split(key, 6)
    scale = 0.1
    w_in = scale * jax.random.normal(ks[0], (n_feature, n_hidden), jnp.float32)
    b_in = scale * jax.random.normal(ks[1], (1, n_hidden), jnp.float32)
    n_extra = num_hidden_layers - 1
    w_hid = scale * jax.random.normal(ks[2], (n_extra, n_hidden, n_hidden), jnp.float32)
    b_hid = scale * jax.random.normal(ks[3], (n_extra, 1, n_hidden), jnp.float32)
    w_out = scale * jax.random.normal(ks[4], (n_hidden, n_output), jnp.float32)
    b_out = scale * jax.random.normal(ks[5], (1, n_output), jnp.float32)
    return w_in, b_in, w_hid, b_hid, w_out, b_out


def reference_forward(x, w_in, b_in, w_hid, b_hid, w_out, b_out):
    """Pure-JAX reference with the same bf16-operand / f32-accumulate contract."""
    bf = jnp.bfloat16
    h = jnp.dot(x.astype(bf), w_in.astype(bf),
                preferred_element_type=jnp.float32) + b_in
    h = jnp.maximum(h, 0.0)
    for i in range(w_hid.shape[0]):
        h = jnp.dot(h.astype(bf), w_hid[i].astype(bf),
                    preferred_element_type=jnp.float32) + b_hid[i]
        h = jnp.maximum(h, 0.0)
    logits = jnp.dot(h.astype(bf), w_out.astype(bf),
                     preferred_element_type=jnp.float32) + b_out
    return jax.nn.softmax(logits, axis=1)


if __name__ == "__main__":
    # Shapes implied by the module: n_feature = 3 masses + 21 means + 21 stds = 45
    batch = 600            # exercises a multi-tile grid (3 tiles of 256, last padded)
    n_feature = 45
    n_hidden = 32
    n_output = 3
    num_hidden_layers = 3  # input layer + 2 extra hidden layers

    key = jax.random.PRNGKey(0)
    k_x, k_p = jax.random.split(key)
    x = jax.random.normal(k_x, (batch, n_feature), jnp.float32)
    raw_params = init_params(k_p, n_feature, n_hidden, n_output, num_hidden_layers)
    padded_params = pad_params(*raw_params)

    y = class_mlp_forward(x, padded_params,
                          n_feature=n_feature, n_output=n_output, tile_rows=256)
    y = jax.block_until_ready(y)

    y_ref = reference_forward(x, *raw_params)
    # bf16 operands + approx EUP reciprocal -> compare at ~1e-3.
    assert y.shape == (batch, n_output), "wrong output shape"
    assert jnp.allclose(y, y_ref, atol=2e-3, rtol=2e-3), "mismatch vs reference"
    assert jnp.allclose(jnp.sum(y, axis=1), 1.0, atol=2e-3), "softmax rows must sum to 1"
    assert bool(jnp.all(jnp.isfinite(y))), "non-finite output"

    print("KERNEL_OK")
</pallas_src>

<mosaic_0001>
module attributes {stable_mosaic.version = 11 : i64} {
  func.func @class_mlp_kernel(%arg0: i32, %arg1: memref<256x128xbf16, #tpu.memory_space<vmem>>, %arg2: memref<128x128xbf16, #tpu.memory_space<vmem>>, %arg3: memref<1x128xf32, #tpu.memory_space<vmem>>, %arg4: memref<2x128x128xbf16, #tpu.memory_space<vmem>>, %arg5: memref<2x1x128xf32, #tpu.memory_space<vmem>>, %arg6: memref<128x128xbf16, #tpu.memory_space<vmem>>, %arg7: memref<1x128xf32, #tpu.memory_space<vmem>>, %arg8: memref<256x128xf32, #tpu.memory_space<vmem>>) attributes {dimension_semantics = [#tpu.dimension_semantics<parallel>], iteration_bounds = array<i64: 3>, scalar_prefetch = 0 : i64, scratch_operands = 0 : i64, tpu.core_type = #tpu.core_type<tc>, window_params = [{transform_indices = @transform_0, window_bounds = array<i64: 256, 128>}, {pipeline_mode = #tpu.pipeline_mode<synchronous>, transform_indices = @transform_1, window_bounds = array<i64: 128, 128>}, {pipeline_mode = #tpu.pipeline_mode<synchronous>, transform_indices = @transform_2, window_bounds = array<i64: 1, 128>}, {pipeline_mode = #tpu.pipeline_mode<synchronous>, transform_indices = @transform_3, window_bounds = array<i64: 2, 128, 128>}, {pipeline_mode = #tpu.pipeline_mode<synchronous>, transform_indices = @transform_4, window_bounds = array<i64: 2, 1, 128>}, {pipeline_mode = #tpu.pipeline_mode<synchronous>, transform_indices = @transform_5, window_bounds = array<i64: 128, 128>}, {pipeline_mode = #tpu.pipeline_mode<synchronous>, transform_indices = @transform_6, window_bounds = array<i64: 1, 128>}, {transform_indices = @transform_7, window_bounds = array<i64: 256, 128>}]} {
    %c0 = arith.constant 0 : index
    %c0_0 = arith.constant 0 : index
    %0 = vector.load %arg1[%c0, %c0_0] : memref<256x128xbf16, #tpu.memory_space<vmem>>, vector<256x128xbf16>
    %c0_1 = arith.constant 0 : index
    %c0_2 = arith.constant 0 : index
    %1 = vector.load %arg2[%c0_1, %c0_2] : memref<128x128xbf16, #tpu.memory_space<vmem>>, vector<128x128xbf16>
    %cst = arith.constant dense<0.000000e+00> : vector<256x128xf32>
    %2 = tpu.matmul %0, %1, %cst {dimension_numbers = #tpu.dot_dimension_numbers<[1], [0], [0], [1], [0, 0, 1, 1], [], []>} : vector<256x128xbf16>, vector<128x128xbf16>, vector<256x128xf32> -> vector<256x128xf32>
    %c0_3 = arith.constant 0 : index
    %c0_4 = arith.constant 0 : index
    %3 = vector.load %arg3[%c0_3, %c0_4] : memref<1x128xf32, #tpu.memory_space<vmem>>, vector<1x128xf32>
    %4 = vector.broadcast %3 : vector<1x128xf32> to vector<256x128xf32>
    %5 = arith.addf %2, %4 : vector<256x128xf32>
    %cst_5 = arith.constant 0.000000e+00 : f32
    %6 = vector.broadcast %cst_5 : f32 to vector<256x128xf32>
    %7 = arith.maximumf %5, %6 : vector<256x128xf32>
    %8 = arith.truncf %7 : vector<256x128xf32> to vector<256x128xbf16>
    %c0_6 = arith.constant 0 : index
    %c0_7 = arith.constant 0 : index
    %c0_8 = arith.constant 0 : index
    %9 = vector.load %arg4[%c0_6, %c0_7, %c0_8] : memref<2x128x128xbf16, #tpu.memory_space<vmem>>, vector<1x128x128xbf16>
    %10 = vector.shape_cast %9 : vector<1x128x128xbf16> to vector<128x128xbf16>
    %cst_9 = arith.constant dense<0.000000e+00> : vector<256x128xf32>
    %11 = tpu.matmul %8, %10, %cst_9 {dimension_numbers = #tpu.dot_dimension_numbers<[1], [0], [0], [1], [0, 0, 1, 1], [], []>} : vector<256x128xbf16>, vector<128x128xbf16>, vector<256x128xf32> -> vector<256x128xf32>
    %c0_10 = arith.constant 0 : index
    %c0_11 = arith.constant 0 : index
    %c0_12 = arith.constant 0 : index
    %12 = vector.load %arg5[%c0_10, %c0_11, %c0_12] : memref<2x1x128xf32, #tpu.memory_space<vmem>>, vector<1x1x128xf32>
    %13 = vector.shape_cast %12 : vector<1x1x128xf32> to vector<1x128xf32>
    %14 = vector.broadcast %13 : vector<1x128xf32> to vector<256x128xf32>
    %15 = arith.addf %11, %14 : vector<256x128xf32>
    %cst_13 = arith.constant 0.000000e+00 : f32
    %16 = vector.broadcast %cst_13 : f32 to vector<256x128xf32>
    %17 = arith.maximumf %15, %16 : vector<256x128xf32>
    %18 = arith.truncf %17 : vector<256x128xf32> to vector<256x128xbf16>
    %c1 = arith.constant 1 : index
    %c0_14 = arith.constant 0 : index
    %c0_15 = arith.constant 0 : index
    %19 = vector.load %arg4[%c1, %c0_14, %c0_15] : memref<2x128x128xbf16, #tpu.memory_space<vmem>>, vector<1x128x128xbf16>
    %20 = vector.shape_cast %19 : vector<1x128x128xbf16> to vector<128x128xbf16>
    %cst_16 = arith.constant dense<0.000000e+00> : vector<256x128xf32>
    %21 = tpu.matmul %18, %20, %cst_16 {dimension_numbers = #tpu.dot_dimension_numbers<[1], [0], [0], [1], [0, 0, 1, 1], [], []>} : vector<256x128xbf16>, vector<128x128xbf16>, vector<256x128xf32> -> vector<256x128xf32>
    %c1_17 = arith.constant 1 : index
    %c0_18 = arith.constant 0 : index
    %c0_19 = arith.constant 0 : index
    %22 = vector.load %arg5[%c1_17, %c0_18, %c0_19] : memref<2x1x128xf32, #tpu.memory_space<vmem>>, vector<1x1x128xf32>
    %23 = vector.shape_cast %22 : vector<1x1x128xf32> to vector<1x128xf32>
    %24 = vector.broadcast %23 : vector<1x128xf32> to vector<256x128xf32>
    %25 = arith.addf %21, %24 : vector<256x128xf32>
    %cst_20 = arith.constant 0.000000e+00 : f32
    %26 = vector.broadcast %cst_20 : f32 to vector<256x128xf32>
    %27 = arith.maximumf %25, %26 : vector<256x128xf32>
    %28 = arith.truncf %27 : vector<256x128xf32> to vector<256x128xbf16>
    %c0_21 = arith.constant 0 : index
    %c0_22 = arith.constant 0 : index
    %29 = vector.load %arg6[%c0_21, %c0_22] : memref<128x128xbf16, #tpu.memory_space<vmem>>, vector<128x128xbf16>
    %cst_23 = arith.constant dense<0.000000e+00> : vector<256x128xf32>
    %30 = tpu.matmul %28, %29, %cst_23 {dimension_numbers = #tpu.dot_dimension_numbers<[1], [0], [0], [1], [0, 0, 1, 1], [], []>} : vector<256x128xbf16>, vector<128x128xbf16>, vector<256x128xf32> -> vector<256x128xf32>
    %c0_24 = arith.constant 0 : index
    %c0_25 = arith.constant 0 : index
    %31 = vector.load %arg7[%c0_24, %c0_25] : memref<1x128xf32, #tpu.memory_space<vmem>>, vector<1x128xf32>
    %32 = vector.broadcast %31 : vector<1x128xf32> to vector<256x128xf32>
    %33 = arith.addf %30, %32 : vector<256x128xf32>
    %cst_26 = arith.constant dense<0xFF800000> : vector<256xf32>
    %34 = vector.multi_reduction <maximumf>, %33, %cst_26 [1] : vector<256x128xf32> to vector<256xf32>
    %35 = vector.shape_cast %34 : vector<256xf32> to vector<256x1xf32>
    %36 = vector.broadcast %35 : vector<256x1xf32> to vector<256x128xf32>
    %37 = arith.subf %33, %36 : vector<256x128xf32>
    %38 = math.exp %37 : vector<256x128xf32>
    %cst_27 = arith.constant dense<0.000000e+00> : vector<256xf32>
    %39 = vector.multi_reduction <add>, %38, %cst_27 [1] : vector<256x128xf32> to vector<256xf32>
    %40 = vector.shape_cast %39 : vector<256xf32> to vector<256x1xf32>
    %41 = tpu.reciprocal %40 {approx = true} : vector<256x1xf32> -> vector<256x1xf32>
    %42 = vector.broadcast %41 : vector<256x1xf32> to vector<256x128xf32>
    %43 = arith.mulf %38, %42 : vector<256x128xf32>
    %c0_28 = arith.constant 0 : index
    %c0_29 = arith.constant 0 : index
    %44 = vector.load %arg8[%c0_28, %c0_29] : memref<256x128xf32, #tpu.memory_space<vmem>>, vector<256x128xf32>
    tpu.vector_store %arg8[%c0_28, %c0_29], %43 {strides = array<i32>} : memref<256x128xf32, #tpu.memory_space<vmem>>, vector<256x128xf32>,
    return
  }
  func.func @transform_0(%arg0: i32) -> (i32, i32) {
    %c0_i32 = arith.constant 0 : i32
    %c0_i32_0 = arith.constant 0 : i32
    return %arg0, %c0_i32 : i32, i32
  }
  func.func @transform_1(%arg0: i32) -> (i32, i32) {
    %c0_i32 = arith.constant 0 : i32
    %c0_i32_0 = arith.constant 0 : i32
    %c0_i32_1 = arith.constant 0 : i32
    return %c0_i32, %c0_i32_0 : i32, i32
  }
  func.func @transform_2(%arg0: i32) -> (i32, i32) {
    %c0_i32 = arith.constant 0 : i32
    %c0_i32_0 = arith.constant 0 : i32
    %c0_i32_1 = arith.constant 0 : i32
    return %c0_i32, %c0_i32_0 : i32, i32
  }
  func.func @transform_3(%arg0: i32) -> (i32, i32, i32) {
    %c0_i32 = arith.constant 0 : i32
    %c0_i32_0 = arith.constant 0 : i32
    %c0_i32_1 = arith.constant 0 : i32
    %c0_i32_2 = arith.constant 0 : i32
    return %c0_i32, %c0_i32_0, %c0_i32_1 : i32, i32, i32
  }
  func.func @transform_4(%arg0: i32) -> (i32, i32, i32) {
    %c0_i32 = arith.constant 0 : i32
    %c0_i32_0 = arith.constant 0 : i32
    %c0_i32_1 = arith.constant 0 : i32
    %c0_i32_2 = arith.constant 0 : i32
    return %c0_i32, %c0_i32_0, %c0_i32_1 : i32, i32, i32
  }
  func.func @transform_5(%arg0: i32) -> (i32, i32) {
    %c0_i32 = arith.constant 0 : i32
    %c0_i32_0 = arith.constant 0 : i32
    %c0_i32_1 = arith.constant 0 : i32
    return %c0_i32, %c0_i32_0 : i32, i32
  }
  func.func @transform_6(%arg0: i32) -> (i32, i32) {
    %c0_i32 = arith.constant 0 : i32
    %c0_i32_0 = arith.constant 0 : i32
    %c0_i32_1 = arith.constant 0 : i32
    return %c0_i32, %c0_i32_0 : i32, i32
  }
  func.func @transform_7(%arg0: i32) -> (i32, i32) {
    %c0_i32 = arith.constant 0 : i32
    %c0_i32_0 = arith.constant 0 : i32
    return %arg0, %c0_i32 : i32, i32
  }
}

</mosaic_0001>

<llo_original>
// kernel: class_mlp_forward.1
$region0: #{class_mlp_forward.1}
  #allocation0 [shape = 'u32[]', space=smem, size = 0x4, offset = 0x4, fixed_abs, tag = 'smem constant byte address 0x4 - core index']
  #allocation1 [shape = 'u32[144,128]{1,0:T(1,128)}', space=vmem, size = 0x12000, scoped, tag = 'internal scratch']
  %s0 = inlined_call_operand.vmem [shape: bf16[768,128], index: 0, kind: input, shape index: {}]
  %s1 = inlined_call_operand.vmem [shape: bf16[128,128], index: 1, kind: input, shape index: {}]
  %s2 = inlined_call_operand.vmem [shape: f32[1,128], index: 2, kind: input, shape index: {}]
  %s3 = inlined_call_operand.vmem [shape: bf16[2,128,128], index: 3, kind: input, shape index: {}]
  %s4 = inlined_call_operand.vmem [shape: f32[2,1,128], index: 4, kind: input, shape index: {}]
  %s5 = inlined_call_operand.vmem [shape: bf16[128,128], index: 5, kind: input, shape index: {}]
  %s6 = inlined_call_operand.vmem [shape: f32[1,128], index: 6, kind: input, shape index: {}]
  %s7 = inlined_call_operand.vmem [shape: f32[768,128], index: 7, kind: output, shape index: {}]
  %s8 = sld [smem:[#allocation0]]
  $region61: #{class_mlp_forward.1} parent=0
    _
  %s10 = ssub.s32 1, %s8
  %s11 = scalar_select 0, %s10, %s8
  loop: start=0, step=1, limit=5
  $region2: #{class_mlp_forward.1} parent=0 // loop_pre_header
    _
  $region3: #{class_mlp_forward.1} parent=0 // loop_header
    %s13 = sphi 0, %s17
    %p14 = scmp.ge.s32.totalorder %s13, 5
    %s23 = sphi 0, %s25
    %s26 = sphi 0, %s23
    %s27 = sphi 0, %s26
    %s43 = sphi 0, %s27
    %s47 = sphi 0, %s47
    %s49 = sphi 0, %s47
    %s50 = sphi 0, %s49
    %s64 = sphi 0, %s50
    %s68 = sphi 0, %s68
    %s70 = sphi 0, %s68
    %s71 = sphi 0, %s70
    %s85 = sphi 0, %s71
    %s89 = sphi 0, %s89
    %s91 = sphi 0, %s89
    %s92 = sphi 0, %s91
    %s106 = sphi 0, %s92
    %s110 = sphi 0, %s110
    %s112 = sphi 0, %s110
    %s113 = sphi 0, %s112
    %s127 = sphi 0, %s113
    %s131 = sphi 0, %s131
    %s133 = sphi 0, %s131
    %s134 = sphi 0, %s133
    %s148 = sphi 0, %s134
    %s152 = sphi 0, %s152
    %s154 = sphi 0, %s152
    %s155 = sphi 0, %s154
    %s169 = sphi 0, %s155
    %s175 = sphi 0, %s177
    %s178 = sphi 0, %s175
    %s179 = sphi 0, %s178
    %s195 = sphi 0, %s179
  $region4: #{class_mlp_forward.1} parent=0 // loop_header_branch
    %16 = sbr.rel (%p14) target = $region8
  $region5: #{class_mlp_forward.1} parent=0 // loop_body
    %s18 = ssub.s32 %s13, 1
    %s19 = ssub.s32 %s13, 2
    %s20 = sadd.s32 %s13, 1
    %s21 = ssub.s32 %s13, %s20
    %p22 = scmp.eq.s32.totalorder %s21, 0
    %s24 = sadd.s32 %s23, 1
    %s25 = scalar_select %p22, %s23, %s24
    %p28 = pneg %p22
    %p29 = scmp.eq.s32.totalorder %s13, 2
    %p30 = por %p28, %p29
    %p31 = scmp.ne.s32.totalorder %s23, %s26
    %p32 = scmp.eq.s32.totalorder %s13, 0
    %p33 = por %p31, %p32
    %p34 = scmp.ne.s32.totalorder %s23, %s26
    %p35 = scmp.eq.s32.totalorder %s18, 2
    %p36 = por %p34, %p35
    %p37 = scmp.ne.s32.totalorder %s26, %s27
    %p38 = scmp.eq.s32.totalorder %s18, 0
    %p39 = por %p37, %p38
    %p40 = scmp.ne.s32.totalorder %s26, %s27
    %p41 = scmp.eq.s32.totalorder %s19, 2
    %p42 = por %p40, %p41
    %p44 = scmp.ne.s32.totalorder %s27, %s43
    %p45 = scmp.eq.s32.totalorder %s19, 0
    %p46 = por %p44, %p45
    %s48 = sadd.s32 %s47, 1
    %p51 = scmp.eq.s32.totalorder %s13, 2
    %p52 = scmp.ne.s32.totalorder %s47, %s49
    %p53 = scmp.eq.s32.totalorder %s13, 0
    %p54 = por %p52, %p53
    %p55 = scmp.ne.s32.totalorder %s47, %s49
    %p56 = scmp.eq.s32.totalorder %s18, 2
    %p57 = por %p55, %p56
    %p58 = scmp.ne.s32.totalorder %s49, %s50
    %p59 = scmp.eq.s32.totalorder %s18, 0
    %p60 = por %p58, %p59
    %p61 = scmp.ne.s32.totalorder %s49, %s50
    %p62 = scmp.eq.s32.totalorder %s19, 2
    %p63 = por %p61, %p62
    %p65 = scmp.ne.s32.totalorder %s50, %s64
    %p66 = scmp.eq.s32.totalorder %s19, 0
    %p67 = por %p65, %p66
    %s69 = sadd.s32 %s68, 1
    %p72 = scmp.eq.s32.totalorder %s13, 2
    %p73 = scmp.ne.s32.totalorder %s68, %s70
    %p74 = scmp.eq.s32.totalorder %s13, 0
    %p75 = por %p73, %p74
    %p76 = scmp.ne.s32.totalorder %s68, %s70
    %p77 = scmp.eq.s32.totalorder %s18, 2
    %p78 = por %p76, %p77
    %p79 = scmp.ne.s32.totalorder %s70, %s71
    %p80 = scmp.eq.s32.totalorder %s18, 0
    %p81 = por %p79, %p80
    %p82 = scmp.ne.s32.totalorder %s70, %s71
    %p83 = scmp.eq.s32.totalorder %s19, 2
    %p84 = por %p82, %p83
    %p86 = scmp.ne.s32.totalorder %s71, %s85
    %p87 = scmp.eq.s32.totalorder %s19, 0
    %p88 = por %p86, %p87
    %s90 = sadd.s32 %s89, 1
    %p93 = scmp.eq.s32.totalorder %s13, 2
    %p94 = scmp.ne.s32.totalorder %s89, %s91
    %p95 = scmp.eq.s32.totalorder %s13, 0
    %p96 = por %p94, %p95
    %p97 = scmp.ne.s32.totalorder %s89, %s91
    %p98 = scmp.eq.s32.totalorder %s18, 2
    %p99 = por %p97, %p98
    %p100 = scmp.ne.s32.totalorder %s91, %s92
    %p101 = scmp.eq.s32.totalorder %s18, 0
    %p102 = por %p100, %p101
    %p103 = scmp.ne.s32.totalorder %s91, %s92
    %p104 = scmp.eq.s32.totalorder %s19, 2
    %p105 = por %p103, %p104
    %p107 = scmp.ne.s32.totalorder %s92, %s106
    %p108 = scmp.eq.s32.totalorder %s19, 0
    %p109 = por %p107, %p108
    %s111 = sadd.s32 %s110, 1
    %p114 = scmp.eq.s32.totalorder %s13, 2
    %p115 = scmp.ne.s32.totalorder %s110, %s112
    %p116 = scmp.eq.s32.totalorder %s13, 0
    %p117 = por %p115, %p116
    %p118 = scmp.ne.s32.totalorder %s110, %s112
    %p119 = scmp.eq.s32.totalorder %s18, 2
    %p120 = por %p118, %p119
    %p121 = scmp.ne.s32.totalorder %s112, %s113
    %p122 = scmp.eq.s32.totalorder %s18, 0
    %p123 = por %p121, %p122
    %p124 = scmp.ne.s32.totalorder %s112, %s113
    %p125 = scmp.eq.s32.totalorder %s19, 2
    %p126 = por %p124, %p125
    %p128 = scmp.ne.s32.totalorder %s113, %s127
    %p129 = scmp.eq.s32.totalorder %s19, 0
    %p130 = por %p128, %p129
    %s132 = sadd.s32 %s131, 1
    %p135 = scmp.eq.s32.totalorder %s13, 2
    %p136 = scmp.ne.s32.totalorder %s131, %s133
    %p137 = scmp.eq.s32.totalorder %s13, 0
    %p138 = por %p136, %p137
    %p139 = scmp.ne.s32.totalorder %s131, %s133
    %p140 = scmp.eq.s32.totalorder %s18, 2
    %p141 = por %p139, %p140
    %p142 = scmp.ne.s32.totalorder %s133, %s134
    %p143 = scmp.eq.s32.totalorder %s18, 0
    %p144 = por %p142, %p143
    %p145 = scmp.ne.s32.totalorder %s133, %s134
    %p146 = scmp.eq.s32.totalorder %s19, 2
    %p147 = por %p145, %p146
    %p149 = scmp.ne.s32.totalorder %s134, %s148
    %p150 = scmp.eq.s32.totalorder %s19, 0
    %p151 = por %p149, %p150
    %s153 = sadd.s32 %s152, 1
    %p156 = scmp.eq.s32.totalorder %s13, 2
    %p157 = scmp.ne.s32.totalorder %s152, %s154
    %p158 = scmp.eq.s32.totalorder %s13, 0
    %p159 = por %p157, %p158
    %p160 = scmp.ne.s32.totalorder %s152, %s154
    %p161 = scmp.eq.s32.totalorder %s18, 2
    %p162 = por %p160, %p161
    %p163 = scmp.ne.s32.totalorder %s154, %s155
    %p164 = scmp.eq.s32.totalorder %s18, 0
    %p165 = por %p163, %p164
    %p166 = scmp.ne.s32.totalorder %s154, %s155
    %p167 = scmp.eq.s32.totalorder %s19, 2
    %p168 = por %p166, %p167
    %p170 = scmp.ne.s32.totalorder %s155, %s169
    %p171 = scmp.eq.s32.totalorder %s19, 0
    %p172 = por %p170, %p171
    %s173 = ssub.s32 %s13, %s20
    %p174 = scmp.eq.s32.totalorder %s173, 0
    %s176 = sadd.s32 %s175, 1
    %s177 = scalar_select %p174, %s175, %s176
    %p180 = pneg %p174
    %p181 = scmp.eq.s32.totalorder %s13, 2
    %p182 = por %p180, %p181
    %p183 = scmp.ne.s32.totalorder %s175, %s178
    %p184 = scmp.eq.s32.totalorder %s13, 0
    %p185 = por %p183, %p184
    %p186 = scmp.ne.s32.totalorder %s175, %s178
    %p187 = scmp.eq.s32.totalorder %s18, 2
    %p188 = por %p186, %p187
    %p189 = scmp.ne.s32.totalorder %s178, %s179
    %p190 = scmp.eq.s32.totalorder %s18, 0
    %p191 = por %p189, %p190
    %p192 = scmp.ne.s32.totalorder %s178, %s179
    %p193 = scmp.eq.s32.totalorder %s19, 2
    %p194 = por %p192, %p193
    %p196 = scmp.ne.s32.totalorder %s179, %s195
    %p197 = scmp.eq.s32.totalorder %s19, 0
    %p198 = por %p196, %p197
    %p199 = scmp.le.s32.totalorder 1, %s13
    %p200 = scmp.lt.s32.totalorder %s13, 4
    %p201 = pnand %p199, %p200
    %p202 = pneg %p201
    // Predicated region
    $region9: #{class_mlp_forward.1} parent=5 // pred_check
      _
    $region10: #{class_mlp_forward.1} parent=5 // pred_check_branch
      %204 = sbr.rel (%p201) target = $region12
    $region11: #{class_mlp_forward.1} parent=5 // pred_region
      %s205 = ssub.s32 %s13, 1
      // Predicated region
      $region13: #{class_mlp_forward.1} parent=11 // pred_check
        %p206 = pneg %p60
      $region14: #{class_mlp_forward.1} parent=11 // pred_check_branch
        %208 = sbr.rel (%p206) target = $region16
      $region15: #{class_mlp_forward.1} parent=11 // pred_region
        _
      $region16: #{class_mlp_forward.1} parent=11 // pred_fallthru
        _
      // Predicated region
      $region17: #{class_mlp_forward.1} parent=11 // pred_check
        %p209 = pneg %p81
      $region18: #{class_mlp_forward.1} parent=11 // pred_check_branch
        %211 = sbr.rel (%p209) target = $region20
      $region19: #{class_mlp_forward.1} parent=11 // pred_region
        _
      $region20: #{class_mlp_forward.1} parent=11 // pred_fallthru
        _
      // Predicated region
      $region21: #{class_mlp_forward.1} parent=11 // pred_check
        %p212 = pneg %p102
      $region22: #{class_mlp_forward.1} parent=11 // pred_check_branch
        %214 = sbr.rel (%p212) target = $region24
      $region23: #{class_mlp_forward.1} parent=11 // pred_region
        _
      $region24: #{class_mlp_forward.1} parent=11 // pred_fallthru
        _
      // Predicated region
      $region25: #{class_mlp_forward.1} parent=11 // pred_check
        %p215 = pneg %p123
      $region26: #{class_mlp_forward.1} parent=11 // pred_check_branch
        %217 = sbr.rel (%p215) target = $region28
      $region27: #{class_mlp_forward.1} parent=11 // pred_region
        _
      $region28: #{class_mlp_forward.1} parent=11 // pred_fallthru
        _
      // Predicated region
      $region29: #{class_mlp_forward.1} parent=11 // pred_check
        %p218 = pneg %p144
      $region30: #{class_mlp_forward.1} parent=11 // pred_check_branch
        %220 = sbr.rel (%p218) target = $region32
      $region31: #{class_mlp_forward.1} parent=11 // pred_region
        _
      $region32: #{class_mlp_forward.1} parent=11 // pred_fallthru
        _
      // Predicated region
      $region33: #{class_mlp_forward.1} parent=11 // pred_check
        %p221 = pneg %p165
      $region34: #{class_mlp_forward.1} parent=11 // pred_check_branch
        %223 = sbr.rel (%p221) target = $region36
      $region35: #{class_mlp_forward.1} parent=11 // pred_region
        _
      $region36: #{class_mlp_forward.1} parent=11 // pred_fallthru
        _
    $region12: #{class_mlp_forward.1} parent=5 // pred_fallthru
      _
    %p224 = scmp.lt.s32.totalorder %s13, 3
    // Predicated region
    $region37: #{class_mlp_forward.1} parent=5 // pred_check
      %p225 = pneg %p224
    $region38: #{class_mlp_forward.1} parent=5 // pred_check_branch
      %227 = sbr.rel (%p225) target = $region40
    $region39: #{class_mlp_forward.1} parent=5 // pred_region
      // Predicated region
      $region41: #{class_mlp_forward.1} parent=39 // pred_check
        %p228 = pneg %p33
      $region42: #{class_mlp_forward.1} parent=39 // pred_check_branch
        %230 = sbr.rel (%p228) target = $region44
      $region43: #{class_mlp_forward.1} parent=39 // pred_region
        %s231 = smul.u32 32, %s13
        %p232 = scmp.lt.s32.totalorder %s231, 95
        %s233 = scalar_select %p232, %s231, 95
        %s234 = smul.addr %s233, 4
        %s235 = scalar_lea.vmem %s0, %s234
        %s236 = smul.u32 32, %s13
      $region44: #{class_mlp_forward.1} parent=39 // pred_fallthru
        _
    $region40: #{class_mlp_forward.1} parent=5 // pred_fallthru
      _
    %p237 = scmp.le.s32.totalorder 1, %s13
    %p238 = scmp.lt.s32.totalorder %s13, 4
    %p239 = pnand %p237, %p238
    %p240 = pneg %p239
    // Predicated region
    $region45: #{class_mlp_forward.1} parent=5 // pred_check
      _
    $region46: #{class_mlp_forward.1} parent=5 // pred_check_branch
      %242 = sbr.rel (%p239) target = $region48
    $region47: #{class_mlp_forward.1} parent=5 // pred_region
      %s243 = ssub.s32 %s13, 1
      %s244 = smul.u32 32, %s18
      %p245 = scmp.lt.s32.totalorder %s244, 95
      %s246 = scalar_select %p245, %s244, 95
      %s247 = smul.addr %s246, 4
      %s248 = scalar_lea.vmem %s0, %s247
      %p249 = pneg %p39
      %p250 = pneg %p36
      %p251 = pneg %p60
      %p252 = pneg %p57
      %p253 = pneg %p81
      %p254 = pneg %p78
      %p255 = pneg %p102
      %p256 = pneg %p99
      %p257 = pneg %p123
      %p258 = pneg %p120
      %p259 = pneg %p144
      %p260 = pneg %p141
      %p261 = pneg %p165
      %p262 = pneg %p162
      %p263 = pneg %p191
      %p264 = pneg %p188
      %s265 = smul.u32 32, %s18
      %p266 = scmp.lt.s32.totalorder %s265, 95
      %s267 = scalar_select %p266, %s265, 95
      %s268 = smul.addr %s267, 8
      %s269 = scalar_lea.vmem %s7, %s268
      %s270 = smul.u32 32, %s18
      %p271 = scmp.lt.s32.totalorder %s270, 95
      %s272 = scalar_select %p271, %s270, 95
      %s273 = smul.addr %s272, 4
      %s274 = scalar_lea.vmem %s0, %s273
      %s275 = smul.u32 32, %s18
      %s276 = smul.u32 32, %s18
      %p277 = scmp.lt.s32.totalorder %s276, 95
      %s278 = scalar_select %p277, %s276, 95
      %s279 = smul.addr %s278, 8
      %s280 = scalar_lea.vmem %s7, %s279
      %s281 = smul.u32 32, %s18
      %v283 = vld [vmem:[%s274] sm:$0xf]
      %v284 = vld [vmem:[%s274 + $0x4] sm:$0xf]
      %v285 = vld [vmem:[%s274 + $0x8] sm:$0xf]
      %v286 = vld [vmem:[%s274 + $0xc] sm:$0xf]
      %v287 = vld [vmem:[%s274 + $0x10] sm:$0xf]
      %v288 = vld [vmem:[%s274 + $0x14] sm:$0xf]
      %v289 = vld [vmem:[%s274 + $0x18] sm:$0xf]
      %v290 = vld [vmem:[%s274 + $0x1c] sm:$0xf]
      %v291 = vld [vmem:[%s274 + $0x20] sm:$0xf]
      %v292 = vld [vmem:[%s274 + $0x24] sm:$0xf]
      %v293 = vld [vmem:[%s274 + $0x28] sm:$0xf]
      %v294 = vld [vmem:[%s274 + $0x2c] sm:$0xf]
      %v295 = vld [vmem:[%s274 + $0x30] sm:$0xf]
      %v296 = vld [vmem:[%s274 + $0x34] sm:$0xf]
      %v297 = vld [vmem:[%s274 + $0x38] sm:$0xf]
      %v298 = vld [vmem:[%s274 + $0x3c] sm:$0xf]
      %v299 = vld [vmem:[%s274 + $0x40] sm:$0xf]
      %v300 = vld [vmem:[%s274 + $0x44] sm:$0xf]
      %v301 = vld [vmem:[%s274 + $0x48] sm:$0xf]
      %v302 = vld [vmem:[%s274 + $0x4c] sm:$0xf]
      %v303 = vld [vmem:[%s274 + $0x50] sm:$0xf]
      %v304 = vld [vmem:[%s274 + $0x54] sm:$0xf]
      %v305 = vld [vmem:[%s274 + $0x58] sm:$0xf]
      %v306 = vld [vmem:[%s274 + $0x5c] sm:$0xf]
      %v307 = vld [vmem:[%s274 + $0x60] sm:$0xf]
      %v308 = vld [vmem:[%s274 + $0x64] sm:$0xf]
      %v309 = vld [vmem:[%s274 + $0x68] sm:$0xf]
      %v310 = vld [vmem:[%s274 + $0x6c] sm:$0xf]
      %v311 = vld [vmem:[%s274 + $0x70] sm:$0xf]
      %v312 = vld [vmem:[%s274 + $0x74] sm:$0xf]
      %v313 = vld [vmem:[%s274 + $0x78] sm:$0xf]
      %v314 = vld [vmem:[%s274 + $0x7c] sm:$0xf]
      %v315 = vld [vmem:[%s1] sm:$0xf]
      %v316 = vld [vmem:[%s1 + $0x4] sm:$0xf]
      %v317 = vld [vmem:[%s1 + $0x8] sm:$0xf]
      %v318 = vld [vmem:[%s1 + $0xc] sm:$0xf]
      %v319 = vld [vmem:[%s1 + $0x10] sm:$0xf]
      %v320 = vld [vmem:[%s1 + $0x14] sm:$0xf]
      %v321 = vld [vmem:[%s1 + $0x18] sm:$0xf]
      %v322 = vld [vmem:[%s1 + $0x1c] sm:$0xf]
      %v323 = vld [vmem:[%s1 + $0x20] sm:$0xf]
      %v324 = vld [vmem:[%s1 + $0x24] sm:$0xf]
      %v325 = vld [vmem:[%s1 + $0x28] sm:$0xf]
      %v326 = vld [vmem:[%s1 + $0x2c] sm:$0xf]
      %v327 = vld [vmem:[%s1 + $0x30] sm:$0xf]
      %v328 = vld [vmem:[%s1 + $0x34] sm:$0xf]
      %v329 = vld [vmem:[%s1 + $0x38] sm:$0xf]
      %v330 = vld [vmem:[%s1 + $0x3c] sm:$0xf]
      %v331 = vld [vmem:[%s2] sm:$0x1]
      %v333 = vlaneseq
      %v334 = vshrl.u32 %v333, 7
      %v335 = vsub.s32 0, %v334
      %v336 = vrot.slane %v331, %v335
      %v370 = vunpack.c.l.b16 %v283
      %v371 = vunpack.c.l.b16 %v284
      %v372 = vunpack.c.l.b16 %v285
      %v373 = vunpack.c.l.b16 %v286
      %v374 = vunpack.c.l.b16 %v287
      %v375 = vunpack.c.l.b16 %v288
      %v376 = vunpack.c.l.b16 %v289
      %v377 = vunpack.c.l.b16 %v290
      %v378 = vunpack.c.l.b16 %v291
      %v379 = vunpack.c.l.b16 %v292
      %v380 = vunpack.c.l.b16 %v293
      %v381 = vunpack.c.l.b16 %v294
      %v382 = vunpack.c.l.b16 %v295
      %v383 = vunpack.c.l.b16 %v296
      %v384 = vunpack.c.l.b16 %v297
      %v385 = vunpack.c.l.b16 %v298
      %v386 = vunpack.c.l.b16 %v299
      %v387 = vunpack.c.l.b16 %v300
      %v388 = vunpack.c.l.b16 %v301
      %v389 = vunpack.c.l.b16 %v302
      %v390 = vunpack.c.l.b16 %v303
      %v391 = vunpack.c.l.b16 %v304
      %v392 = vunpack.c.l.b16 %v305
      %v393 = vunpack.c.l.b16 %v306
      %v394 = vunpack.c.l.b16 %v307
      %v395 = vunpack.c.l.b16 %v308
      %v396 = vunpack.c.l.b16 %v309
      %v397 = vunpack.c.l.b16 %v310
      %v398 = vunpack.c.l.b16 %v311
      %v399 = vunpack.c.l.b16 %v312
      %v400 = vunpack.c.l.b16 %v313
      %v401 = vunpack.c.l.b16 %v314
      %v402 = vpack.c.b16 %v371, %v370
      %v403 = vpack.c.b16 %v373, %v372
      %v404 = vpack.c.b16 %v375, %v374
      %v405 = vpack.c.b16 %v377, %v376
      %v406 = vpack.c.b16 %v379, %v378
      %v407 = vpack.c.b16 %v381, %v380
      %v408 = vpack.c.b16 %v383, %v382
      %v409 = vpack.c.b16 %v385, %v384
      %v410 = vpack.c.b16 %v387, %v386
      %v411 = vpack.c.b16 %v389, %v388
      %v412 = vpack.c.b16 %v391, %v390
      %v413 = vpack.c.b16 %v393, %v392
      %v414 = vpack.c.b16 %v395, %v394
      %v415 = vpack.c.b16 %v397, %v396
      %v416 = vpack.c.b16 %v399, %v398
      %v417 = vpack.c.b16 %v401, %v400
      %v450 = vunpack.c.l.b16 %v315
      %v451 = vunpack.c.l.b16 %v316
      %v452 = vunpack.c.l.b16 %v317
      %v453 = vunpack.c.l.b16 %v318
      %v454 = vunpack.c.l.b16 %v319
      %v455 = vunpack.c.l.b16 %v320
      %v456 = vunpack.c.l.b16 %v321
      %v457 = vunpack.c.l.b16 %v322
      %v458 = vunpack.c.l.b16 %v323
      %v459 = vunpack.c.l.b16 %v324
      %v460 = vunpack.c.l.b16 %v325
      %v461 = vunpack.c.l.b16 %v326
      %v462 = vunpack.c.l.b16 %v327
      %v463 = vunpack.c.l.b16 %v328
      %v464 = vunpack.c.l.b16 %v329
      %v465 = vunpack.c.l.b16 %v330
      %v466 = vpack.c.b16 %v451, %v450
      %v467 = vpack.c.b16 %v453, %v452
      %v468 = vpack.c.b16 %v455, %v454
      %v469 = vpack.c.b16 %v457, %v456
      %v470 = vpack.c.b16 %v459, %v458
      %v471 = vpack.c.b16 %v461, %v460
      %v472 = vpack.c.b16 %v463, %v462
      %v473 = vpack.c.b16 %v465, %v464
      %482 = vmatprep.subr.bf16.mxu0 0
      %483 = vmatpush1.bf16.msra.mxu0 %v466
      %484 = vmatprep.subr.bf16.mxu0 0
      %485 = vmatpush1.bf16.msra.mxu0 %v467
      %486 = vmatprep.subr.bf16.mxu0 0
      %487 = vmatpush1.bf16.msra.mxu0 %v468
      %488 = vmatprep.subr.bf16.mxu0 0
      %489 = vmatpush1.bf16.msra.mxu0 %v469
      %490 = vmatprep.subr.bf16.mxu0 0
      %491 = vmatpush1.bf16.msra.mxu0 %v470
      %492 = vmatprep.subr.bf16.mxu0 0
      %493 = vmatpush1.bf16.msra.mxu0 %v471
      %494 = vmatprep.subr.bf16.mxu0 0
      %495 = vmatpush1.bf16.msra.mxu0 %v472
      %496 = vmatprep.subr.bf16.mxu0 0
      %497 = vmatpush1.bf16.msra.mxu0 %v473
      %498 = vmatprep.subr.bf16.mxu0 0
      %499 = vmatpush1.bf16.msra.mxu0 0
      %500 = vmatprep.subr.bf16.mxu0 0
      %501 = vmatpush1.bf16.msra.mxu0 0
      %502 = vmatprep.subr.bf16.mxu0 0
      %503 = vmatpush1.bf16.msra.mxu0 0
      %504 = vmatprep.subr.bf16.mxu0 0
      %505 = vmatpush1.bf16.msra.mxu0 0
      %506 = vmatprep.subr.bf16.mxu0 0
      %507 = vmatpush1.bf16.msra.mxu0 0
      %508 = vmatprep.subr.bf16.mxu0 0
      %509 = vmatpush1.bf16.msra.mxu0 0
      %510 = vmatprep.subr.bf16.mxu0 0
      %511 = vmatpush1.bf16.msra.mxu0 0
      %512 = vmatprep.subr.bf16.mxu0 0
      %513 = vmatpush1.bf16.msra.mxu0 0
      %514 = vmatprep.mubr.bf16.mxu0 0
      %515 = vmatmul.mubr.bf16.gmra.mrb[0].mxu0 %v402
      %v516 = vpop.f32.mrb[0].mxu0
      %v517 = vadd.f32 %v336, %v516
      %v518 = vpop.f32.mrb[0].mxu0
      %v519 = vpop.f32.mrb[0].mxu0
      %v520 = vadd.f32 %v336, %v519
      %v521 = vpop.f32.mrb[0].mxu0
      %522 = vmatprep.mubr.bf16.mxu0 0
      %523 = vmatmul.mubr.bf16.gmra.mrb[0].mxu0 %v403
      %v524 = vpop.f32.mrb[0].mxu0
      %v525 = vadd.f32 %v336, %v524
      %v526 = vpop.f32.mrb[0].mxu0
      %v527 = vpop.f32.mrb[0].mxu0
      %v528 = vadd.f32 %v336, %v527
      %v529 = vpop.f32.mrb[0].mxu0
      %530 = vmatprep.mubr.bf16.mxu0 0
      %531 = vmatmul.mubr.bf16.gmra.mrb[0].mxu0 %v404
      %v532 = vpop.f32.mrb[0].mxu0
      %v533 = vadd.f32 %v336, %v532
      %v534 = vpop.f32.mrb[0].mxu0
      %v535 = vpop.f32.mrb[0].mxu0
      %v536 = vadd.f32 %v336, %v535
      %v537 = vpop.f32.mrb[0].mxu0
      %538 = vmatprep.mubr.bf16.mxu0 0
      %539 = vmatmul.mubr.bf16.gmra.mrb[0].mxu0 %v405
      %v540 = vpop.f32.mrb[0].mxu0
      %v541 = vadd.f32 %v336, %v540
      %v542 = vpop.f32.mrb[0].mxu0
      %v543 = vpop.f32.mrb[0].mxu0
      %v544 = vadd.f32 %v336, %v543
      %v545 = vpop.f32.mrb[0].mxu0
      %546 = vmatprep.mubr.bf16.mxu0 0
      %547 = vmatmul.mubr.bf16.gmra.mrb[0].mxu0 %v406
      %v548 = vpop.f32.mrb[0].mxu0
      %v549 = vadd.f32 %v336, %v548
      %v550 = vpop.f32.mrb[0].mxu0
      %v551 = vpop.f32.mrb[0].mxu0
      %v552 = vadd.f32 %v336, %v551
      %v553 = vpop.f32.mrb[0].mxu0
      %554 = vmatprep.mubr.bf16.mxu0 0
      %555 = vmatmul.mubr.bf16.gmra.mrb[0].mxu0 %v407
      %v556 = vpop.f32.mrb[0].mxu0
      %v557 = vadd.f32 %v336, %v556
      %v558 = vpop.f32.mrb[0].mxu0
      %v559 = vpop.f32.mrb[0].mxu0
      %v560 = vadd.f32 %v336, %v559
      %v561 = vpop.f32.mrb[0].mxu0
      %562 = vmatprep.mubr.bf16.mxu0 0
      %563 = vmatmul.mubr.bf16.gmra.mrb[0].mxu0 %v408
      %v564 = vpop.f32.mrb[0].mxu0
      %v565 = vadd.f32 %v336, %v564
      %v566 = vpop.f32.mrb[0].mxu0
      %v567 = vpop.f32.mrb[0].mxu0
      %v568 = vadd.f32 %v336, %v567
      %v569 = vpop.f32.mrb[0].mxu0
      %570 = vmatprep.mubr.bf16.mxu0 0
      %571 = vmatmul.mubr.bf16.gmra.mrb[0].mxu0 %v409
      %v572 = vpop.f32.mrb[0].mxu0
      %v573 = vadd.f32 %v336, %v572
      %v574 = vpop.f32.mrb[0].mxu0
      %v575 = vpop.f32.mrb[0].mxu0
      %v576 = vadd.f32 %v336, %v575
      %v577 = vpop.f32.mrb[0].mxu0
      %578 = vmatprep.mubr.bf16.mxu0 0
      %579 = vmatmul.mubr.bf16.gmra.mrb[0].mxu0 %v410
      %v580 = vpop.f32.mrb[0].mxu0
      %v581 = vadd.f32 %v336, %v580
      %v582 = vpop.f32.mrb[0].mxu0
      %v583 = vpop.f32.mrb[0].mxu0
      %v584 = vadd.f32 %v336, %v583
      %v585 = vpop.f32.mrb[0].mxu0
      %586 = vmatprep.mubr.bf16.mxu0 0
      %587 = vmatmul.mubr.bf16.gmra.mrb[0].mxu0 %v411
      %v588 = vpop.f32.mrb[0].mxu0
      %v589 = vadd.f32 %v336, %v588
      %v590 = vpop.f32.mrb[0].mxu0
      %v591 = vpop.f32.mrb[0].mxu0
      %v592 = vadd.f32 %v336, %v591
      %v593 = vpop.f32.mrb[0].mxu0
      %594 = vmatprep.mubr.bf16.mxu0 0
      %595 = vmatmul.mubr.bf16.gmra.mrb[0].mxu0 %v412
      %v596 = vpop.f32.mrb[0].mxu0
      %v597 = vadd.f32 %v336, %v596
      %v598 = vpop.f32.mrb[0].mxu0
      %v599 = vpop.f32.mrb[0].mxu0
      %v600 = vadd.f32 %v336, %v599
      %v601 = vpop.f32.mrb[0].mxu0
      %602 = vmatprep.mubr.bf16.mxu0 0
      %603 = vmatmul.mubr.bf16.gmra.mrb[0].mxu0 %v413
      %v604 = vpop.f32.mrb[0].mxu0
      %v605 = vadd.f32 %v336, %v604
      %v606 = vpop.f32.mrb[0].mxu0
      %v607 = vpop.f32.mrb[0].mxu0
      %v608 = vadd.f32 %v336, %v607
      %v609 = vpop.f32.mrb[0].mxu0
      %610 = vmatprep.mubr.bf16.mxu0 0
      %611 = vmatmul.mubr.bf16.gmra.mrb[0].mxu0 %v414
      %v612 = vpop.f32.mrb[0].mxu0
      %v613 = vadd.f32 %v336, %v612
      %v614 = vpop.f32.mrb[0].mxu0
      %v615 = vpop.f32.mrb[0].mxu0
      %v616 = vadd.f32 %v336, %v615
      %v617 = vpop.f32.mrb[0].mxu0
      %618 = vmatprep.mubr.bf16.mxu0 0
      %619 = vmatmul.mubr.bf16.gmra.mrb[0].mxu0 %v415
      %v620 = vpop.f32.mrb[0].mxu0
      %v621 = vadd.f32 %v336, %v620
      %v622 = vpop.f32.mrb[0].mxu0
      %v623 = vpop.f32.mrb[0].mxu0
      %v624 = vadd.f32 %v336, %v623
      %v625 = vpop.f32.mrb[0].mxu0
      %626 = vmatprep.mubr.bf16.mxu0 0
      %627 = vmatmul.mubr.bf16.gmra.mrb[0].mxu0 %v416
      %v628 = vpop.f32.mrb[0].mxu0
      %v629 = vadd.f32 %v336, %v628
      %v630 = vpop.f32.mrb[0].mxu0
      %v631 = vpop.f32.mrb[0].mxu0
      %v632 = vadd.f32 %v336, %v631
      %v633 = vpop.f32.mrb[0].mxu0
      %634 = vmatprep.mubr.bf16.mxu0 0
      %635 = vmatmul.mubr.bf16.gmra.mrb[0].mxu0 %v417
      %v636 = vpop.f32.mrb[0].mxu0
      %v637 = vadd.f32 %v336, %v636
      %v638 = vpop.f32.mrb[0].mxu0
      %v639 = vpop.f32.mrb[0].mxu0
      %v640 = vadd.f32 %v336, %v639
      %v641 = vpop.f32.mrb[0].mxu0
      %642 = vdwg.mxu0
      %v643 = vmax.f32 %v517, 0.0
      %v644 = vmax.f32 %v520, 0.0
      %v645 = vmax.f32 %v525, 0.0
      %v646 = vmax.f32 %v528, 0.0
      %v647 = vmax.f32 %v533, 0.0
      %v648 = vmax.f32 %v536, 0.0
      %v649 = vmax.f32 %v541, 0.0
      %v650 = vmax.f32 %v544, 0.0
      %v651 = vmax.f32 %v549, 0.0
      %v652 = vmax.f32 %v552, 0.0
      %v653 = vmax.f32 %v557, 0.0
      %v654 = vmax.f32 %v560, 0.0
      %v655 = vmax.f32 %v565, 0.0
      %v656 = vmax.f32 %v568, 0.0
      %v657 = vmax.f32 %v573, 0.0
      %v658 = vmax.f32 %v576, 0.0
      %v659 = vmax.f32 %v581, 0.0
      %v660 = vmax.f32 %v584, 0.0
      %v661 = vmax.f32 %v589, 0.0
      %v662 = vmax.f32 %v592, 0.0
      %v663 = vmax.f32 %v597, 0.0
      %v664 = vmax.f32 %v600, 0.0
      %v665 = vmax.f32 %v605, 0.0
      %v666 = vmax.f32 %v608, 0.0
      %v667 = vmax.f32 %v613, 0.0
      %v668 = vmax.f32 %v616, 0.0
      %v669 = vmax.f32 %v621, 0.0
      %v670 = vmax.f32 %v624, 0.0
      %v671 = vmax.f32 %v629, 0.0
      %v672 = vmax.f32 %v632, 0.0
      %v673 = vmax.f32 %v637, 0.0
      %v674 = vmax.f32 %v640, 0.0
      %v675 = vpack.c.bf16 %v644, %v643
      %v676 = vpack.c.bf16 %v646, %v645
      %v677 = vpack.c.bf16 %v648, %v647
      %v678 = vpack.c.bf16 %v650, %v649
      %v679 = vpack.c.bf16 %v652, %v651
      %v680 = vpack.c.bf16 %v654, %v653
      %v681 = vpack.c.bf16 %v656, %v655
      %v682 = vpack.c.bf16 %v658, %v657
      %v683 = vpack.c.bf16 %v660, %v659
      %v684 = vpack.c.bf16 %v662, %v661
      %v685 = vpack.c.bf16 %v664, %v663
      %v686 = vpack.c.bf16 %v666, %v665
      %v687 = vpack.c.bf16 %v668, %v667
      %v688 = vpack.c.bf16 %v670, %v669
      %v689 = vpack.c.bf16 %v672, %v671
      %v690 = vpack.c.bf16 %v674, %v673
      %v691 = vld [vmem:[%s3] sm:$0xf]
      %v692 = vld [vmem:[%s3 + $0x4] sm:$0xf]
      %v693 = vld [vmem:[%s3 + $0x8] sm:$0xf]
      %v694 = vld [vmem:[%s3 + $0xc] sm:$0xf]
      %v695 = vld [vmem:[%s3 + $0x10] sm:$0xf]
      %v696 = vld [vmem:[%s3 + $0x14] sm:$0xf]
      %v697 = vld [vmem:[%s3 + $0x18] sm:$0xf]
      %v698 = vld [vmem:[%s3 + $0x1c] sm:$0xf]
      %v699 = vld [vmem:[%s3 + $0x20] sm:$0xf]
      %v700 = vld [vmem:[%s3 + $0x24] sm:$0xf]
      %v701 = vld [vmem:[%s3 + $0x28] sm:$0xf]
      %v702 = vld [vmem:[%s3 + $0x2c] sm:$0xf]
      %v703 = vld [vmem:[%s3 + $0x30] sm:$0xf]
      %v704 = vld [vmem:[%s3 + $0x34] sm:$0xf]
      %v705 = vld [vmem:[%s3 + $0x38] sm:$0xf]
      %v706 = vld [vmem:[%s3 + $0x3c] sm:$0xf]
      %v707 = vld [vmem:[%s4] sm:$0x1]
      %v709 = vlaneseq
      %v710 = vshrl.u32 %v709, 7
      %v711 = vsub.s32 0, %v710
      %v712 = vrot.slane %v707, %v711
      %v730 = vunpack.c.l.b16 %v691
      %v731 = vunpack.c.l.b16 %v692
      %v732 = vunpack.c.l.b16 %v693
      %v733 = vunpack.c.l.b16 %v694
      %v734 = vunpack.c.l.b16 %v695
      %v735 = vunpack.c.l.b16 %v696
      %v736 = vunpack.c.l.b16 %v697
      %v737 = vunpack.c.l.b16 %v698
      %v738 = vunpack.c.l.b16 %v699
      %v739 = vunpack.c.l.b16 %v700
      %v740 = vunpack.c.l.b16 %v701
      %v741 = vunpack.c.l.b16 %v702
      %v742 = vunpack.c.l.b16 %v703
      %v743 = vunpack.c.l.b16 %v704
      %v744 = vunpack.c.l.b16 %v705
      %v745 = vunpack.c.l.b16 %v706
      %v746 = vpack.c.b16 %v731, %v730
      %v747 = vpack.c.b16 %v733, %v732
      %v748 = vpack.c.b16 %v735, %v734
      %v749 = vpack.c.b16 %v737, %v736
      %v750 = vpack.c.b16 %v739, %v738
      %v751 = vpack.c.b16 %v741, %v740
      %v752 = vpack.c.b16 %v743, %v742
      %v753 = vpack.c.b16 %v745, %v744
      %762 = vmatprep.subr.bf16.mxu0 0
      %763 = vmatpush1.bf16.msra.mxu0 %v746
      %764 = vmatprep.subr.bf16.mxu0 0
      %765 = vmatpush1.bf16.msra.mxu0 %v747
      %766 = vmatprep.subr.bf16.mxu0 0
      %767 = vmatpush1.bf16.msra.mxu0 %v748
      %768 = vmatprep.subr.bf16.mxu0 0
      %769 = vmatpush1.bf16.msra.mxu0 %v749
      %770 = vmatprep.subr.bf16.mxu0 0
      %771 = vmatpush1.bf16.msra.mxu0 %v750
      %772 = vmatprep.subr.bf16.mxu0 0
      %773 = vmatpush1.bf16.msra.mxu0 %v751
      %774 = vmatprep.subr.bf16.mxu0 0
      %775 = vmatpush1.bf16.msra.mxu0 %v752
      %776 = vmatprep.subr.bf16.mxu0 0
      %777 = vmatpush1.bf16.msra.mxu0 %v753
      %778 = vmatprep.subr.bf16.mxu0 0
      %779 = vmatpush1.bf16.msra.mxu0 0
      %780 = vmatprep.subr.bf16.mxu0 0
      %781 = vmatpush1.bf16.msra.mxu0 0
      %782 = vmatprep.subr.bf16.mxu0 0
      %783 = vmatpush1.bf16.msra.mxu0 0
      %784 = vmatprep.subr.bf16.mxu0 0
      %785 = vmatpush1.bf16.msra.mxu0 0
      %786 = vmatprep.subr.bf16.mxu0 0
      %787 = vmatpush1.bf16.msra.mxu0 0
      %788 = vmatprep.subr.bf16.mxu0 0
      %789 = vmatpush1.bf16.msra.mxu0 0
      %790 = vmatprep.subr.bf16.mxu0 0
      %791 = vmatpush1.bf16.msra.mxu0 0
      %792 = vmatprep.subr.bf16.mxu0 0
      %793 = vmatpush1.bf16.msra.mxu0 0
      %794 = vmatprep.mubr.bf16.mxu0 0
      %795 = vmatmul.mubr.bf16.gmra.mrb[0].mxu0 %v675
      %v796 = vpop.f32.mrb[0].mxu0
      %v797 = vadd.f32 %v712, %v796
      %v798 = vpop.f32.mrb[0].mxu0
      %v799 = vpop.f32.mrb[0].mxu0
      %v800 = vadd.f32 %v712, %v799
      %v801 = vpop.f32.mrb[0].mxu0
      %802 = vmatprep.mubr.bf16.mxu0 0
      %803 = vmatmul.mubr.bf16.gmra.mrb[0].mxu0 %v676
      %v804 = vpop.f32.mrb[0].mxu0
      %v805 = vadd.f32 %v712, %v804
      %v806 = vpop.f32.mrb[0].mxu0
      %v807 = vpop.f32.mrb[0].mxu0
      %v808 = vadd.f32 %v712, %v807
      %v809 = vpop.f32.mrb[0].mxu0
      %810 = vmatprep.mubr.bf16.mxu0 0
      %811 = vmatmul.mubr.bf16.gmra.mrb[0].mxu0 %v677
      %v812 = vpop.f32.mrb[0].mxu0
      %v813 = vadd.f32 %v712, %v812
      %v814 = vpop.f32.mrb[0].mxu0
      %v815 = vpop.f32.mrb[0].mxu0
      %v816 = vadd.f32 %v712, %v815
      %v817 = vpop.f32.mrb[0].mxu0
      %818 = vmatprep.mubr.bf16.mxu0 0
      %819 = vmatmul.mubr.bf16.gmra.mrb[0].mxu0 %v678
      %v820 = vpop.f32.mrb[0].mxu0
      %v821 = vadd.f32 %v712, %v820
      %v822 = vpop.f32.mrb[0].mxu0
      %v823 = vpop.f32.mrb[0].mxu0
      %v824 = vadd.f32 %v712, %v823
      %v825 = vpop.f32.mrb[0].mxu0
      %826 = vmatprep.mubr.bf16.mxu0 0
      %827 = vmatmul.mubr.bf16.gmra.mrb[0].mxu0 %v679
      %v828 = vpop.f32.mrb[0].mxu0
      %v829 = vadd.f32 %v712, %v828
      %v830 = vpop.f32.mrb[0].mxu0
      %v831 = vpop.f32.mrb[0].mxu0
      %v832 = vadd.f32 %v712, %v831
      %v833 = vpop.f32.mrb[0].mxu0
      %834 = vmatprep.mubr.bf16.mxu0 0
      %835 = vmatmul.mubr.bf16.gmra.mrb[0].mxu0 %v680
      %v836 = vpop.f32.mrb[0].mxu0
      %v837 = vadd.f32 %v712, %v836
      %v838 = vpop.f32.mrb[0].mxu0
      %v839 = vpop.f32.mrb[0].mxu0
      %v840 = vadd.f32 %v712, %v839
      %v841 = vpop.f32.mrb[0].mxu0
      %842 = vmatprep.mubr.bf16.mxu0 0
      %843 = vmatmul.mubr.bf16.gmra.mrb[0].mxu0 %v681
      %v844 = vpop.f32.mrb[0].mxu0
      %v845 = vadd.f32 %v712, %v844
      %v846 = vpop.f32.mrb[0].mxu0
      %v847 = vpop.f32.mrb[0].mxu0
      %v848 = vadd.f32 %v712, %v847
      %v849 = vpop.f32.mrb[0].mxu0
      %850 = vmatprep.mubr.bf16.mxu0 0
      %851 = vmatmul.mubr.bf16.gmra.mrb[0].mxu0 %v682
      %v852 = vpop.f32.mrb[0].mxu0
      %v853 = vadd.f32 %v712, %v852
      %v854 = vpop.f32.mrb[0].mxu0
      %v855 = vpop.f32.mrb[0].mxu0
      %v856 = vadd.f32 %v712, %v855
      %v857 = vpop.f32.mrb[0].mxu0
      %858 = vmatprep.mubr.bf16.mxu0 0
      %859 = vmatmul.mubr.bf16.gmra.mrb[0].mxu0 %v683
      %v860 = vpop.f32.mrb[0].mxu0
      %v861 = vadd.f32 %v712, %v860
      %v862 = vpop.f32.mrb[0].mxu0
      %v863 = vpop.f32.mrb[0].mxu0
      %v864 = vadd.f32 %v712, %v863
      %v865 = vpop.f32.mrb[0].mxu0
      %866 = vmatprep.mubr.bf16.mxu0 0
      %867 = vmatmul.mubr.bf16.gmra.mrb[0].mxu0 %v684
      %v868 = vpop.f32.mrb[0].mxu0
      %v869 = vadd.f32 %v712, %v868
      %v870 = vpop.f32.mrb[0].mxu0
      %v871 = vpop.f32.mrb[0].mxu0
      %v872 = vadd.f32 %v712, %v871
      %v873 = vpop.f32.mrb[0].mxu0
      %874 = vmatprep.mubr.bf16.mxu0 0
      %875 = vmatmul.mubr.bf16.gmra.mrb[0].mxu0 %v685
      %v876 = vpop.f32.mrb[0].mxu0
      %v877 = vadd.f32 %v712, %v876
      %v878 = vpop.f32.mrb[0].mxu0
      %v879 = vpop.f32.mrb[0].mxu0
      %v880 = vadd.f32 %v712, %v879
      %v881 = vpop.f32.mrb[0].mxu0
      %882 = vmatprep.mubr.bf16.mxu0 0
      %883 = vmatmul.mubr.bf16.gmra.mrb[0].mxu0 %v686
      %v884 = vpop.f32.mrb[0].mxu0
      %v885 = vadd.f32 %v712, %v884
      %v886 = vpop.f32.mrb[0].mxu0
      %v887 = vpop.f32.mrb[0].mxu0
      %v888 = vadd.f32 %v712, %v887
      %v889 = vpop.f32.mrb[0].mxu0
      %890 = vmatprep.mubr.bf16.mxu0 0
      %891 = vmatmul.mubr.bf16.gmra.mrb[0].mxu0 %v687
      %v892 = vpop.f32.mrb[0].mxu0
      %v893 = vadd.f32 %v712, %v892
      %v894 = vpop.f32.mrb[0].mxu0
      %v895 = vpop.f32.mrb[0].mxu0
      %v896 = vadd.f32 %v712, %v895
      %v897 = vpop.f32.mrb[0].mxu0
      %898 = vmatprep.mubr.bf16.mxu0 0
      %899 = vmatmul.mubr.bf16.gmra.mrb[0].mxu0 %v688
      %v900 = vpop.f32.mrb[0].mxu0
      %v901 = vadd.f32 %v712, %v900
      %v902 = vpop.f32.mrb[0].mxu0
      %v903 = vpop.f32.mrb[0].mxu0
      %v904 = vadd.f32 %v712, %v903
      %v905 = vpop.f32.mrb[0].mxu0
      %906 = vmatprep.mubr.bf16.mxu0 0
      %907 = vmatmul.mubr.bf16.gmra.mrb[0].mxu0 %v689
      %v908 = vpop.f32.mrb[0].mxu0
      %v909 = vadd.f32 %v712, %v908
      %v910 = vpop.f32.mrb[0].mxu0
      %v911 = vpop.f32.mrb[0].mxu0
      %v912 = vadd.f32 %v712, %v911
      %v913 = vpop.f32.mrb[0].mxu0
      %914 = vmatprep.mubr.bf16.mxu0 0
      %915 = vmatmul.mubr.bf16.gmra.mrb[0].mxu0 %v690
      %v916 = vpop.f32.mrb[0].mxu0
      %v917 = vadd.f32 %v712, %v916
      %v918 = vpop.f32.mrb[0].mxu0
      %v919 = vpop.f32.mrb[0].mxu0
      %v920 = vadd.f32 %v712, %v919
      %v921 = vpop.f32.mrb[0].mxu0
      %922 = vdwg.mxu0
      %v923 = vmax.f32 %v797, 0.0
      %v924 = vmax.f32 %v800, 0.0
      %v925 = vmax.f32 %v805, 0.0
      %v926 = vmax.f32 %v808, 0.0
      %v927 = vmax.f32 %v813, 0.0
      %v928 = vmax.f32 %v816, 0.0
      %v929 = vmax.f32 %v821, 0.0
      %v930 = vmax.f32 %v824, 0.0
      %v931 = vmax.f32 %v829, 0.0
      %v932 = vmax.f32 %v832, 0.0
      %v933 = vmax.f32 %v837, 0.0
      %v934 = vmax.f32 %v840, 0.0
      %v935 = vmax.f32 %v845, 0.0
      %v936 = vmax.f32 %v848, 0.0
      %v937 = vmax.f32 %v853, 0.0
      %v938 = vmax.f32 %v856, 0.0
      %v939 = vmax.f32 %v861, 0.0
      %v940 = vmax.f32 %v864, 0.0
      %v941 = vmax.f32 %v869, 0.0
      %v942 = vmax.f32 %v872, 0.0
      %v943 = vmax.f32 %v877, 0.0
      %v944 = vmax.f32 %v880, 0.0
      %v945 = vmax.f32 %v885, 0.0
      %v946 = vmax.f32 %v888, 0.0
      %v947 = vmax.f32 %v893, 0.0
      %v948 = vmax.f32 %v896, 0.0
      %v949 = vmax.f32 %v901, 0.0
      %v950 = vmax.f32 %v904, 0.0
      %v951 = vmax.f32 %v909, 0.0
      %v952 = vmax.f32 %v912, 0.0
      %v953 = vmax.f32 %v917, 0.0
      %v954 = vmax.f32 %v920, 0.0
      %v955 = vpack.c.bf16 %v924, %v923
      %v956 = vpack.c.bf16 %v926, %v925
      %v957 = vpack.c.bf16 %v928, %v927
      %v958 = vpack.c.bf16 %v930, %v929
      %v959 = vpack.c.bf16 %v932, %v931
      %v960 = vpack.c.bf16 %v934, %v933
      %v961 = vpack.c.bf16 %v936, %v935
      %v962 = vpack.c.bf16 %v938, %v937
      %v963 = vpack.c.bf16 %v940, %v939
      %v964 = vpack.c.bf16 %v942, %v941
      %v965 = vpack.c.bf16 %v944, %v943
      %v966 = vpack.c.bf16 %v946, %v945
      %v967 = vpack.c.bf16 %v948, %v947
      %v968 = vpack.c.bf16 %v950, %v949
      %v969 = vpack.c.bf16 %v952, %v951
      %v970 = vpack.c.bf16 %v954, %v953
      %s971 = scalar_lea.vmem %s3, 64
      %v972 = vld [vmem:[%s971] sm:$0xf]
      %v973 = vld [vmem:[%s971 + $0x4] sm:$0xf]
      %v974 = vld [vmem:[%s971 + $0x8] sm:$0xf]
      %v975 = vld [vmem:[%s971 + $0xc] sm:$0xf]
      %v976 = vld [vmem:[%s971 + $0x10] sm:$0xf]
      %v977 = vld [vmem:[%s971 + $0x14] sm:$0xf]
      %v978 = vld [vmem:[%s971 + $0x18] sm:$0xf]
      %v979 = vld [vmem:[%s971 + $0x1c] sm:$0xf]
      %v980 = vld [vmem:[%s971 + $0x20] sm:$0xf]
      %v981 = vld [vmem:[%s971 + $0x24] sm:$0xf]
      %v982 = vld [vmem:[%s971 + $0x28] sm:$0xf]
      %v983 = vld [vmem:[%s971 + $0x2c] sm:$0xf]
      %v984 = vld [vmem:[%s971 + $0x30] sm:$0xf]
      %v985 = vld [vmem:[%s971 + $0x34] sm:$0xf]
      %v986 = vld [vmem:[%s971 + $0x38] sm:$0xf]
      %v987 = vld [vmem:[%s971 + $0x3c] sm:$0xf]
      %s988 = scalar_lea.vmem %s4, 1
      %v989 = vld [vmem:[%s988] sm:$0x1]
      %v991 = vlaneseq
      %v992 = vshrl.u32 %v991, 7
      %v993 = vsub.s32 0, %v992
      %v994 = vrot.slane %v989, %v993
      %v1012 = vunpack.c.l.b16 %v972
      %v1013 = vunpack.c.l.b16 %v973
      %v1014 = vunpack.c.l.b16 %v974
      %v1015 = vunpack.c.l.b16 %v975
      %v1016 = vunpack.c.l.b16 %v976
      %v1017 = vunpack.c.l.b16 %v977
      %v1018 = vunpack.c.l.b16 %v978
      %v1019 = vunpack.c.l.b16 %v979
      %v1020 = vunpack.c.l.b16 %v980
      %v1021 = vunpack.c.l.b16 %v981
      %v1022 = vunpack.c.l.b16 %v982
      %v1023 = vunpack.c.l.b16 %v983
      %v1024 = vunpack.c.l.b16 %v984
      %v1025 = vunpack.c.l.b16 %v985
      %v1026 = vunpack.c.l.b16 %v986
      %v1027 = vunpack.c.l.b16 %v987
      %v1028 = vpack.c.b16 %v1013, %v1012
      %v1029 = vpack.c.b16 %v1015, %v1014
      %v1030 = vpack.c.b16 %v1017, %v1016
      %v1031 = vpack.c.b16 %v1019, %v1018
      %v1032 = vpack.c.b16 %v1021, %v1020
      %v1033 = vpack.c.b16 %v1023, %v1022
      %v1034 = vpack.c.b16 %v1025, %v1024
      %v1035 = vpack.c.b16 %v1027, %v1026
      %1044 = vmatprep.subr.bf16.mxu0 0
      %1045 = vmatpush1.bf16.msra.mxu0 %v1028
      %1046 = vmatprep.subr.bf16.mxu0 0
      %1047 = vmatpush1.bf16.msra.mxu0 %v1029
      %1048 = vmatprep.subr.bf16.mxu0 0
      %1049 = vmatpush1.bf16.msra.mxu0 %v1030
      %1050 = vmatprep.subr.bf16.mxu0 0
      %1051 = vmatpush1.bf16.msra.mxu0 %v1031
      %1052 = vmatprep.subr.bf16.mxu0 0
      %1053 = vmatpush1.bf16.msra.mxu0 %v1032
      %1054 = vmatprep.subr.bf16.mxu0 0
      %1055 = vmatpush1.bf16.msra.mxu0 %v1033
      %1056 = vmatprep.subr.bf16.mxu0 0
      %1057 = vmatpush1.bf16.msra.mxu0 %v1034
      %1058 = vmatprep.subr.bf16.mxu0 0
      %1059 = vmatpush1.bf16.msra.mxu0 %v1035
      %1060 = vmatprep.subr.bf16.mxu0 0
      %1061 = vmatpush1.bf16.msra.mxu0 0
      %1062 = vmatprep.subr.bf16.mxu0 0
      %1063 = vmatpush1.bf16.msra.mxu0 0
      %1064 = vmatprep.subr.bf16.mxu0 0
      %1065 = vmatpush1.bf16.msra.mxu0 0
      %1066 = vmatprep.subr.bf16.mxu0 0
      %1067 = vmatpush1.bf16.msra.mxu0 0
      %1068 = vmatprep.subr.bf16.mxu0 0
      %1069 = vmatpush1.bf16.msra.mxu0 0
      %1070 = vmatprep.subr.bf16.mxu0 0
      %1071 = vmatpush1.bf16.msra.mxu0 0
      %1072 = vmatprep.subr.bf16.mxu0 0
      %1073 = vmatpush1.bf16.msra.mxu0 0
      %1074 = vmatprep.subr.bf16.mxu0 0
      %1075 = vmatpush1.bf16.msra.mxu0 0
      %1076 = vmatprep.mubr.bf16.mxu0 0
      %1077 = vmatmul.mubr.bf16.gmra.mrb[0].mxu0 %v955
      %v1078 = vpop.f32.mrb[0].mxu0
      %v1079 = vadd.f32 %v994, %v1078
      %v1080 = vpop.f32.mrb[0].mxu0
      %v1081 = vpop.f32.mrb[0].mxu0
      %v1082 = vadd.f32 %v994, %v1081
      %v1083 = vpop.f32.mrb[0].mxu0
      %1084 = vmatprep.mubr.bf16.mxu0 0
      %1085 = vmatmul.mubr.bf16.gmra.mrb[0].mxu0 %v956
      %v1086 = vpop.f32.mrb[0].mxu0
      %v1087 = vadd.f32 %v994, %v1086
      %v1088 = vpop.f32.mrb[0].mxu0
      %v1089 = vpop.f32.mrb[0].mxu0
      %v1090 = vadd.f32 %v994, %v1089
      %v1091 = vpop.f32.mrb[0].mxu0
      %1092 = vmatprep.mubr.bf16.mxu0 0
      %1093 = vmatmul.mubr.bf16.gmra.mrb[0].mxu0 %v957
      %v1094 = vpop.f32.mrb[0].mxu0
      %v1095 = vadd.f32 %v994, %v1094
      %v1096 = vpop.f32.mrb[0].mxu0
      %v1097 = vpop.f32.mrb[0].mxu0
      %v1098 = vadd.f32 %v994, %v1097
      %v1099 = vpop.f32.mrb[0].mxu0
      %1100 = vmatprep.mubr.bf16.mxu0 0
      %1101 = vmatmul.mubr.bf16.gmra.mrb[0].mxu0 %v958
      %v1102 = vpop.f32.mrb[0].mxu0
      %v1103 = vadd.f32 %v994, %v1102
      %v1104 = vpop.f32.mrb[0].mxu0
      %v1105 = vpop.f32.mrb[0].mxu0
      %v1106 = vadd.f32 %v994, %v1105
      %v1107 = vpop.f32.mrb[0].mxu0
      %1108 = vmatprep.mubr.bf16.mxu0 0
      %1109 = vmatmul.mubr.bf16.gmra.mrb[0].mxu0 %v959
      %v1110 = vpop.f32.mrb[0].mxu0
      %v1111 = vadd.f32 %v994, %v1110
      %v1112 = vpop.f32.mrb[0].mxu0
      %v1113 = vpop.f32.mrb[0].mxu0
      %v1114 = vadd.f32 %v994, %v1113
      %v1115 = vpop.f32.mrb[0].mxu0
      %1116 = vmatprep.mubr.bf16.mxu0 0
      %1117 = vmatmul.mubr.bf16.gmra.mrb[0].mxu0 %v960
      %v1118 = vpop.f32.mrb[0].mxu0
      %v1119 = vadd.f32 %v994, %v1118
      %v1120 = vpop.f32.mrb[0].mxu0
      %v1121 = vpop.f32.mrb[0].mxu0
      %v1122 = vadd.f32 %v994, %v1121
      %v1123 = vpop.f32.mrb[0].mxu0
      %1124 = vmatprep.mubr.bf16.mxu0 0
      %1125 = vmatmul.mubr.bf16.gmra.mrb[0].mxu0 %v961
      %v1126 = vpop.f32.mrb[0].mxu0
      %v1127 = vadd.f32 %v994, %v1126
      %v1128 = vpop.f32.mrb[0].mxu0
      %v1129 = vpop.f32.mrb[0].mxu0
      %v1130 = vadd.f32 %v994, %v1129
      %v1131 = vpop.f32.mrb[0].mxu0
      %1132 = vmatprep.mubr.bf16.mxu0 0
      %1133 = vmatmul.mubr.bf16.gmra.mrb[0].mxu0 %v962
      %v1134 = vpop.f32.mrb[0].mxu0
      %v1135 = vadd.f32 %v994, %v1134
      %v1136 = vpop.f32.mrb[0].mxu0
      %v1137 = vpop.f32.mrb[0].mxu0
      %v1138 = vadd.f32 %v994, %v1137
      %v1139 = vpop.f32.mrb[0].mxu0
      %1140 = vmatprep.mubr.bf16.mxu0 0
      %1141 = vmatmul.mubr.bf16.gmra.mrb[0].mxu0 %v963
      %v1142 = vpop.f32.mrb[0].mxu0
      %v1143 = vadd.f32 %v994, %v1142
      %v1144 = vpop.f32.mrb[0].mxu0
      %v1145 = vpop.f32.mrb[0].mxu0
      %v1146 = vadd.f32 %v994, %v1145
      %v1147 = vpop.f32.mrb[0].mxu0
      %1148 = vmatprep.mubr.bf16.mxu0 0
      %1149 = vmatmul.mubr.bf16.gmra.mrb[0].mxu0 %v964
      %v1150 = vpop.f32.mrb[0].mxu0
      %v1151 = vadd.f32 %v994, %v1150
      %v1152 = vpop.f32.mrb[0].mxu0
      %v1153 = vpop.f32.mrb[0].mxu0
      %v1154 = vadd.f32 %v994, %v1153
      %v1155 = vpop.f32.mrb[0].mxu0
      %1156 = vmatprep.mubr.bf16.mxu0 0
      %1157 = vmatmul.mubr.bf16.gmra.mrb[0].mxu0 %v965
      %v1158 = vpop.f32.mrb[0].mxu0
      %v1159 = vadd.f32 %v994, %v1158
      %v1160 = vpop.f32.mrb[0].mxu0
      %v1161 = vpop.f32.mrb[0].mxu0
      %v1162 = vadd.f32 %v994, %v1161
      %v1163 = vpop.f32.mrb[0].mxu0
      %1164 = vmatprep.mubr.bf16.mxu0 0
      %1165 = vmatmul.mubr.bf16.gmra.mrb[0].mxu0 %v966
      %v1166 = vpop.f32.mrb[0].mxu0
      %v1167 = vadd.f32 %v994, %v1166
      %v1168 = vpop.f32.mrb[0].mxu0
      %v1169 = vpop.f32.mrb[0].mxu0
      %v1170 = vadd.f32 %v994, %v1169
      %v1171 = vpop.f32.mrb[0].mxu0
      %1172 = vmatprep.mubr.bf16.mxu0 0
      %1173 = vmatmul.mubr.bf16.gmra.mrb[0].mxu0 %v967
      %v1174 = vpop.f32.mrb[0].mxu0
      %v1175 = vadd.f32 %v994, %v1174
      %v1176 = vpop.f32.mrb[0].mxu0
      %v1177 = vpop.f32.mrb[0].mxu0
      %v1178 = vadd.f32 %v994, %v1177
      %v1179 = vpop.f32.mrb[0].mxu0
      %1180 = vmatprep.mubr.bf16.mxu0 0
      %1181 = vmatmul.mubr.bf16.gmra.mrb[0].mxu0 %v968
      %v1182 = vpop.f32.mrb[0].mxu0
      %v1183 = vadd.f32 %v994, %v1182
      %v1184 = vpop.f32.mrb[0].mxu0
      %v1185 = vpop.f32.mrb[0].mxu0
      %v1186 = vadd.f32 %v994, %v1185
      %v1187 = vpop.f32.mrb[0].mxu0
      %1188 = vmatprep.mubr.bf16.mxu0 0
      %1189 = vmatmul.mubr.bf16.gmra.mrb[0].mxu0 %v969
      %v1190 = vpop.f32.mrb[0].mxu0
      %v1191 = vadd.f32 %v994, %v1190
      %v1192 = vpop.f32.mrb[0].mxu0
      %v1193 = vpop.f32.mrb[0].mxu0
      %v1194 = vadd.f32 %v994, %v1193
      %v1195 = vpop.f32.mrb[0].mxu0
      %1196 = vmatprep.mubr.bf16.mxu0 0
      %1197 = vmatmul.mubr.bf16.gmra.mrb[0].mxu0 %v970
      %v1198 = vpop.f32.mrb[0].mxu0
      %v1199 = vadd.f32 %v994, %v1198
      %v1200 = vpop.f32.mrb[0].mxu0
      %v1201 = vpop.f32.mrb[0].mxu0
      %v1202 = vadd.f32 %v994, %v1201
      %v1203 = vpop.f32.mrb[0].mxu0
      %1204 = vdwg.mxu0
      %v1205 = vmax.f32 %v1079, 0.0
      %v1206 = vmax.f32 %v1082, 0.0
      %v1207 = vmax.f32 %v1087, 0.0
      %v1208 = vmax.f32 %v1090, 0.0
      %v1209 = vmax.f32 %v1095, 0.0
      %v1210 = vmax.f32 %v1098, 0.0
      %v1211 = vmax.f32 %v1103, 0.0
      %v1212 = vmax.f32 %v1106, 0.0
      %v1213 = vmax.f32 %v1111, 0.0
      %v1214 = vmax.f32 %v1114, 0.0
      %v1215 = vmax.f32 %v1119, 0.0
      %v1216 = vmax.f32 %v1122, 0.0
      %v1217 = vmax.f32 %v1127, 0.0
      %v1218 = vmax.f32 %v1130, 0.0
      %v1219 = vmax.f32 %v1135, 0.0
      %v1220 = vmax.f32 %v1138, 0.0
      %v1221 = vmax.f32 %v1143, 0.0
      %v1222 = vmax.f32 %v1146, 0.0
      %v1223 = vmax.f32 %v1151, 0.0
      %v1224 = vmax.f32 %v1154, 0.0
      %v1225 = vmax.f32 %v1159, 0.0
      %v1226 = vmax.f32 %v1162, 0.0
      %v1227 = vmax.f32 %v1167, 0.0
      %v1228 = vmax.f32 %v1170, 0.0
      %v1229 = vmax.f32 %v1175, 0.0
      %v1230 = vmax.f32 %v1178, 0.0
      %v1231 = vmax.f32 %v1183, 0.0
      %v1232 = vmax.f32 %v1186, 0.0
      %v1233 = vmax.f32 %v1191, 0.0
      %v1234 = vmax.f32 %v1194, 0.0
      %v1235 = vmax.f32 %v1199, 0.0
      %v1236 = vmax.f32 %v1202, 0.0
      %v1237 = vpack.c.bf16 %v1206, %v1205
      %v1238 = vpack.c.bf16 %v1208, %v1207
      %v1239 = vpack.c.bf16 %v1210, %v1209
      %v1240 = vpack.c.bf16 %v1212, %v1211
      %v1241 = vpack.c.bf16 %v1214, %v1213
      %v1242 = vpack.c.bf16 %v1216, %v1215
      %v1243 = vpack.c.bf16 %v1218, %v1217
      %v1244 = vpack.c.bf16 %v1220, %v1219
      %v1245 = vpack.c.bf16 %v1222, %v1221
      %v1246 = vpack.c.bf16 %v1224, %v1223
      %v1247 = vpack.c.bf16 %v1226, %v1225
      %v1248 = vpack.c.bf16 %v1228, %v1227
      %v1249 = vpack.c.bf16 %v1230, %v1229
      %v1250 = vpack.c.bf16 %v1232, %v1231
      %v1251 = vpack.c.bf16 %v1234, %v1233
      %v1252 = vpack.c.bf16 %v1236, %v1235
      %v1253 = vld [vmem:[%s5] sm:$0xf]
      %v1254 = vld [vmem:[%s5 + $0x4] sm:$0xf]
      %v1255 = vld [vmem:[%s5 + $0x8] sm:$0xf]
      %v1256 = vld [vmem:[%s5 + $0xc] sm:$0xf]
      %v1257 = vld [vmem:[%s5 + $0x10] sm:$0xf]
      %v1258 = vld [vmem:[%s5 + $0x14] sm:$0xf]
      %v1259 = vld [vmem:[%s5 + $0x18] sm:$0xf]
      %v1260 = vld [vmem:[%s5 + $0x1c] sm:$0xf]
      %v1261 = vld [vmem:[%s5 + $0x20] sm:$0xf]
      %v1262 = vld [vmem:[%s5 + $0x24] sm:$0xf]
      %v1263 = vld [vmem:[%s5 + $0x28] sm:$0xf]
      %v1264 = vld [vmem:[%s5 + $0x2c] sm:$0xf]
      %v1265 = vld [vmem:[%s5 + $0x30] sm:$0xf]
      %v1266 = vld [vmem:[%s5 + $0x34] sm:$0xf]
      %v1267 = vld [vmem:[%s5 + $0x38] sm:$0xf]
      %v1268 = vld [vmem:[%s5 + $0x3c] sm:$0xf]
      %v1269 = vld [vmem:[%s6] sm:$0x1]
      %v1271 = vlaneseq
      %v1272 = vshrl.u32 %v1271, 7
      %v1273 = vsub.s32 0, %v1272
      %v1274 = vrot.slane %v1269, %v1273
      %v1292 = vunpack.c.l.b16 %v1253
      %v1293 = vunpack.c.l.b16 %v1254
      %v1294 = vunpack.c.l.b16 %v1255
      %v1295 = vunpack.c.l.b16 %v1256
      %v1296 = vunpack.c.l.b16 %v1257
      %v1297 = vunpack.c.l.b16 %v1258
      %v1298 = vunpack.c.l.b16 %v1259
      %v1299 = vunpack.c.l.b16 %v1260
      %v1300 = vunpack.c.l.b16 %v1261
      %v1301 = vunpack.c.l.b16 %v1262
      %v1302 = vunpack.c.l.b16 %v1263
      %v1303 = vunpack.c.l.b16 %v1264
      %v1304 = vunpack.c.l.b16 %v1265
      %v1305 = vunpack.c.l.b16 %v1266
      %v1306 = vunpack.c.l.b16 %v1267
      %v1307 = vunpack.c.l.b16 %v1268
      %v1308 = vpack.c.b16 %v1293, %v1292
      %v1309 = vpack.c.b16 %v1295, %v1294
      %v1310 = vpack.c.b16 %v1297, %v1296
      %v1311 = vpack.c.b16 %v1299, %v1298
      %v1312 = vpack.c.b16 %v1301, %v1300
      %v1313 = vpack.c.b16 %v1303, %v1302
      %v1314 = vpack.c.b16 %v1305, %v1304
      %v1315 = vpack.c.b16 %v1307, %v1306
      %1324 = vmatprep.subr.bf16.mxu0 0
      %1325 = vmatpush1.bf16.msra.mxu0 %v1308
      %1326 = vmatprep.subr.bf16.mxu0 0
      %1327 = vmatpush1.bf16.msra.mxu0 %v1309
      %1328 = vmatprep.subr.bf16.mxu0 0
      %1329 = vmatpush1.bf16.msra.mxu0 %v1310
      %1330 = vmatprep.subr.bf16.mxu0 0
      %1331 = vmatpush1.bf16.msra.mxu0 %v1311
      %1332 = vmatprep.subr.bf16.mxu0 0
      %1333 = vmatpush1.bf16.msra.mxu0 %v1312
      %1334 = vmatprep.subr.bf16.mxu0 0
      %1335 = vmatpush1.bf16.msra.mxu0 %v1313
      %1336 = vmatprep.subr.bf16.mxu0 0
      %1337 = vmatpush1.bf16.msra.mxu0 %v1314
      %1338 = vmatprep.subr.bf16.mxu0 0
      %1339 = vmatpush1.bf16.msra.mxu0 %v1315
      %1340 = vmatprep.subr.bf16.mxu0 0
      %1341 = vmatpush1.bf16.msra.mxu0 0
      %1342 = vmatprep.subr.bf16.mxu0 0
      %1343 = vmatpush1.bf16.msra.mxu0 0
      %1344 = vmatprep.subr.bf16.mxu0 0
      %1345 = vmatpush1.bf16.msra.mxu0 0
      %1346 = vmatprep.subr.bf16.mxu0 0
      %1347 = vmatpush1.bf16.msra.mxu0 0
      %1348 = vmatprep.subr.bf16.mxu0 0
      %1349 = vmatpush1.bf16.msra.mxu0 0
      %1350 = vmatprep.subr.bf16.mxu0 0
      %1351 = vmatpush1.bf16.msra.mxu0 0
      %1352 = vmatprep.subr.bf16.mxu0 0
      %1353 = vmatpush1.bf16.msra.mxu0 0
      %1354 = vmatprep.subr.bf16.mxu0 0
      %1355 = vmatpush1.bf16.msra.mxu0 0
      %1356 = vmatprep.mubr.bf16.mxu0 0
      %1357 = vmatmul.mubr.bf16.gmra.mrb[0].mxu0 %v1237
      %v1358 = vpop.f32.mrb[0].mxu0
      %v1359 = vadd.f32 %v1274, %v1358
      %v1360 = vpop.f32.mrb[0].mxu0
      %v1361 = vpop.f32.mrb[0].mxu0
      %v1362 = vadd.f32 %v1274, %v1361
      %v1363 = vpop.f32.mrb[0].mxu0
      %1364 = vmatprep.mubr.bf16.mxu0 0
      %1365 = vmatmul.mubr.bf16.gmra.mrb[0].mxu0 %v1238
      %v1366 = vpop.f32.mrb[0].mxu0
      %v1367 = vadd.f32 %v1274, %v1366
      %v1368 = vpop.f32.mrb[0].mxu0
      %v1369 = vpop.f32.mrb[0].mxu0
      %v1370 = vadd.f32 %v1274, %v1369
      %v1371 = vpop.f32.mrb[0].mxu0
      %1372 = vmatprep.mubr.bf16.mxu0 0
      %1373 = vmatmul.mubr.bf16.gmra.mrb[0].mxu0 %v1239
      %v1374 = vpop.f32.mrb[0].mxu0
      %v1375 = vadd.f32 %v1274, %v1374
      %v1376 = vpop.f32.mrb[0].mxu0
      %v1377 = vpop.f32.mrb[0].mxu0
      %v1378 = vadd.f32 %v1274, %v1377
      %v1379 = vpop.f32.mrb[0].mxu0
      %1380 = vmatprep.mubr.bf16.mxu0 0
      %1381 = vmatmul.mubr.bf16.gmra.mrb[0].mxu0 %v1240
      %v1382 = vpop.f32.mrb[0].mxu0
      %v1383 = vadd.f32 %v1274, %v1382
      %v1384 = vpop.f32.mrb[0].mxu0
      %v1385 = vpop.f32.mrb[0].mxu0
      %v1386 = vadd.f32 %v1274, %v1385
      %v1387 = vpop.f32.mrb[0].mxu0
      %1388 = vmatprep.mubr.bf16.mxu0 0
      %1389 = vmatmul.mubr.bf16.gmra.mrb[0].mxu0 %v1241
      %v1390 = vpop.f32.mrb[0].mxu0
      %v1391 = vadd.f32 %v1274, %v1390
      %v1392 = vpop.f32.mrb[0].mxu0
      %v1393 = vpop.f32.mrb[0].mxu0
      %v1394 = vadd.f32 %v1274, %v1393
      %v1395 = vpop.f32.mrb[0].mxu0
      %1396 = vmatprep.mubr.bf16.mxu0 0
      %1397 = vmatmul.mubr.bf16.gmra.mrb[0].mxu0 %v1242
      %v1398 = vpop.f32.mrb[0].mxu0
      %v1399 = vadd.f32 %v1274, %v1398
      %v1400 = vpop.f32.mrb[0].mxu0
      %v1401 = vpop.f32.mrb[0].mxu0
      %v1402 = vadd.f32 %v1274, %v1401
      %v1403 = vpop.f32.mrb[0].mxu0
      %1404 = vmatprep.mubr.bf16.mxu0 0
      %1405 = vmatmul.mubr.bf16.gmra.mrb[0].mxu0 %v1243
      %v1406 = vpop.f32.mrb[0].mxu0
      %v1407 = vadd.f32 %v1274, %v1406
      %v1408 = vpop.f32.mrb[0].mxu0
      %v1409 = vpop.f32.mrb[0].mxu0
      %v1410 = vadd.f32 %v1274, %v1409
      %v1411 = vpop.f32.mrb[0].mxu0
      %1412 = vmatprep.mubr.bf16.mxu0 0
      %1413 = vmatmul.mubr.bf16.gmra.mrb[0].mxu0 %v1244
      %v1414 = vpop.f32.mrb[0].mxu0
      %v1415 = vadd.f32 %v1274, %v1414
      %v1416 = vpop.f32.mrb[0].mxu0
      %v1417 = vpop.f32.mrb[0].mxu0
      %v1418 = vadd.f32 %v1274, %v1417
      %v1419 = vpop.f32.mrb[0].mxu0
      %1420 = vmatprep.mubr.bf16.mxu0 0
      %1421 = vmatmul.mubr.bf16.gmra.mrb[0].mxu0 %v1245
      %v1422 = vpop.f32.mrb[0].mxu0
      %v1423 = vadd.f32 %v1274, %v1422
      %v1424 = vpop.f32.mrb[0].mxu0
      %v1425 = vpop.f32.mrb[0].mxu0
      %v1426 = vadd.f32 %v1274, %v1425
      %v1427 = vpop.f32.mrb[0].mxu0
      %1428 = vmatprep.mubr.bf16.mxu0 0
      %1429 = vmatmul.mubr.bf16.gmra.mrb[0].mxu0 %v1246
      %v1430 = vpop.f32.mrb[0].mxu0
      %v1431 = vadd.f32 %v1274, %v1430
      %v1432 = vpop.f32.mrb[0].mxu0
      %v1433 = vpop.f32.mrb[0].mxu0
      %v1434 = vadd.f32 %v1274, %v1433
      %v1435 = vpop.f32.mrb[0].mxu0
      %1436 = vmatprep.mubr.bf16.mxu0 0
      %1437 = vmatmul.mubr.bf16.gmra.mrb[0].mxu0 %v1247
      %v1438 = vpop.f32.mrb[0].mxu0
      %v1439 = vadd.f32 %v1274, %v1438
      %v1440 = vpop.f32.mrb[0].mxu0
      %v1441 = vpop.f32.mrb[0].mxu0
      %v1442 = vadd.f32 %v1274, %v1441
      %v1443 = vpop.f32.mrb[0].mxu0
      %1444 = vmatprep.mubr.bf16.mxu0 0
      %1445 = vmatmul.mubr.bf16.gmra.mrb[0].mxu0 %v1248
      %v1446 = vpop.f32.mrb[0].mxu0
      %v1447 = vadd.f32 %v1274, %v1446
      %v1448 = vpop.f32.mrb[0].mxu0
      %v1449 = vpop.f32.mrb[0].mxu0
      %v1450 = vadd.f32 %v1274, %v1449
      %v1451 = vpop.f32.mrb[0].mxu0
      %1452 = vmatprep.mubr.bf16.mxu0 0
      %1453 = vmatmul.mubr.bf16.gmra.mrb[0].mxu0 %v1249
      %v1454 = vpop.f32.mrb[0].mxu0
      %v1455 = vadd.f32 %v1274, %v1454
      %v1456 = vpop.f32.mrb[0].mxu0
      %v1457 = vpop.f32.mrb[0].mxu0
      %v1458 = vadd.f32 %v1274, %v1457
      %v1459 = vpop.f32.mrb[0].mxu0
      %1460 = vmatprep.mubr.bf16.mxu0 0
      %1461 = vmatmul.mubr.bf16.gmra.mrb[0].mxu0 %v1250
      %v1462 = vpop.f32.mrb[0].mxu0
      %v1463 = vadd.f32 %v1274, %v1462
      %v1464 = vpop.f32.mrb[0].mxu0
      %v1465 = vpop.f32.mrb[0].mxu0
      %v1466 = vadd.f32 %v1274, %v1465
      %v1467 = vpop.f32.mrb[0].mxu0
      %1468 = vmatprep.mubr.bf16.mxu0 0
      %1469 = vmatmul.mubr.bf16.gmra.mrb[0].mxu0 %v1251
      %v1470 = vpop.f32.mrb[0].mxu0
      %v1471 = vadd.f32 %v1274, %v1470
      %v1472 = vpop.f32.mrb[0].mxu0
      %v1473 = vpop.f32.mrb[0].mxu0
      %v1474 = vadd.f32 %v1274, %v1473
      %v1475 = vpop.f32.mrb[0].mxu0
      %1476 = vmatprep.mubr.bf16.mxu0 0
      %1477 = vmatmul.mubr.bf16.gmra.mrb[0].mxu0 %v1252
      %v1478 = vpop.f32.mrb[0].mxu0
      %v1479 = vadd.f32 %v1274, %v1478
      %v1480 = vpop.f32.mrb[0].mxu0
      %v1481 = vpop.f32.mrb[0].mxu0
      %v1482 = vadd.f32 %v1274, %v1481
      %v1483 = vpop.f32.mrb[0].mxu0
      %1484 = vdwg.mxu0
      %1485 = vmax.xlane.f32.xlu0 %v1359
      %v1486 = vpop.xlane.xlu0 %1485
      %1487 = vmax.xlane.f32.xlu0 %v1362
      %v1488 = vpop.xlane.xlu0 %1487
      %1489 = vmax.xlane.f32.xlu0 %v1367
      %v1490 = vpop.xlane.xlu0 %1489
      %1491 = vmax.xlane.f32.xlu0 %v1370
      %v1492 = vpop.xlane.xlu0 %1491
      %1493 = vmax.xlane.f32.xlu0 %v1375
      %v1494 = vpop.xlane.xlu0 %1493
      %1495 = vmax.xlane.f32.xlu0 %v1378
      %v1496 = vpop.xlane.xlu0 %1495
      %1497 = vmax.xlane.f32.xlu0 %v1383
      %v1498 = vpop.xlane.xlu0 %1497
      %1499 = vmax.xlane.f32.xlu0 %v1386
      %v1500 = vpop.xlane.xlu0 %1499
      %1501 = vmax.xlane.f32.xlu0 %v1391
      %v1502 = vpop.xlane.xlu0 %1501
      %1503 = vmax.xlane.f32.xlu0 %v1394
      %v1504 = vpop.xlane.xlu0 %1503
      %1505 = vmax.xlane.f32.xlu0 %v1399
      %v1506 = vpop.xlane.xlu0 %1505
      %1507 = vmax.xlane.f32.xlu0 %v1402
      %v1508 = vpop.xlane.xlu0 %1507
      %1509 = vmax.xlane.f32.xlu0 %v1407
      %v1510 = vpop.xlane.xlu0 %1509
      %1511 = vmax.xlane.f32.xlu0 %v1410
      %v1512 = vpop.xlane.xlu0 %1511
      %1513 = vmax.xlane.f32.xlu0 %v1415
      %v1514 = vpop.xlane.xlu0 %1513
      %1515 = vmax.xlane.f32.xlu0 %v1418
      %v1516 = vpop.xlane.xlu0 %1515
      %1517 = vmax.xlane.f32.xlu0 %v1423
      %v1518 = vpop.xlane.xlu0 %1517
      %1519 = vmax.xlane.f32.xlu0 %v1426
      %v1520 = vpop.xlane.xlu0 %1519
      %1521 = vmax.xlane.f32.xlu0 %v1431
      %v1522 = vpop.xlane.xlu0 %1521
      %1523 = vmax.xlane.f32.xlu0 %v1434
      %v1524 = vpop.xlane.xlu0 %1523
      %1525 = vmax.xlane.f32.xlu0 %v1439
      %v1526 = vpop.xlane.xlu0 %1525
      %1527 = vmax.xlane.f32.xlu0 %v1442
      %v1528 = vpop.xlane.xlu0 %1527
      %1529 = vmax.xlane.f32.xlu0 %v1447
      %v1530 = vpop.xlane.xlu0 %1529
      %1531 = vmax.xlane.f32.xlu0 %v1450
      %v1532 = vpop.xlane.xlu0 %1531
      %1533 = vmax.xlane.f32.xlu0 %v1455
      %v1534 = vpop.xlane.xlu0 %1533
      %1535 = vmax.xlane.f32.xlu0 %v1458
      %v1536 = vpop.xlane.xlu0 %1535
      %1537 = vmax.xlane.f32.xlu0 %v1463
      %v1538 = vpop.xlane.xlu0 %1537
      %1539 = vmax.xlane.f32.xlu0 %v1466
      %v1540 = vpop.xlane.xlu0 %1539
      %1541 = vmax.xlane.f32.xlu0 %v1471
      %v1542 = vpop.xlane.xlu0 %1541
      %1543 = vmax.xlane.f32.xlu0 %v1474
      %v1544 = vpop.xlane.xlu0 %1543
      %1545 = vmax.xlane.f32.xlu0 %v1479
      %v1546 = vpop.xlane.xlu0 %1545
      %1547 = vmax.xlane.f32.xlu0 %v1482
      %v1548 = vpop.xlane.xlu0 %1547
      %v1549 = vsub.f32 %v1359, %v1486
      %v1550 = vsub.f32 %v1362, %v1488
      %v1551 = vsub.f32 %v1367, %v1490
      %v1552 = vsub.f32 %v1370, %v1492
      %v1553 = vsub.f32 %v1375, %v1494
      %v1554 = vsub.f32 %v1378, %v1496
      %v1555 = vsub.f32 %v1383, %v1498
      %v1556 = vsub.f32 %v1386, %v1500
      %v1557 = vsub.f32 %v1391, %v1502
      %v1558 = vsub.f32 %v1394, %v1504
      %v1559 = vsub.f32 %v1399, %v1506
      %v1560 = vsub.f32 %v1402, %v1508
      %v1561 = vsub.f32 %v1407, %v1510
      %v1562 = vsub.f32 %v1410, %v1512
      %v1563 = vsub.f32 %v1415, %v1514
      %v1564 = vsub.f32 %v1418, %v1516
      %v1565 = vsub.f32 %v1423, %v1518
      %v1566 = vsub.f32 %v1426, %v1520
      %v1567 = vsub.f32 %v1431, %v1522
      %v1568 = vsub.f32 %v1434, %v1524
      %v1569 = vsub.f32 %v1439, %v1526
      %v1570 = vsub.f32 %v1442, %v1528
      %v1571 = vsub.f32 %v1447, %v1530
      %v1572 = vsub.f32 %v1450, %v1532
      %v1573 = vsub.f32 %v1455, %v1534
      %v1574 = vsub.f32 %v1458, %v1536
      %v1575 = vsub.f32 %v1463, %v1538
      %v1576 = vsub.f32 %v1466, %v1540
      %v1577 = vsub.f32 %v1471, %v1542
      %v1578 = vsub.f32 %v1474, %v1544
      %v1579 = vsub.f32 %v1479, %v1546
      %v1580 = vsub.f32 %v1482, %v1548
      %v1581 = vmul.f32 %v1549, 1.442695
      %v1582 = vpow.pop %v1581
      %v1583 = vmul.f32 %v1550, 1.442695
      %v1584 = vpow.pop %v1583
      %v1585 = vmul.f32 %v1551, 1.442695
      %v1586 = vpow.pop %v1585
      %v1587 = vmul.f32 %v1552, 1.442695
      %v1588 = vpow.pop %v1587
      %v1589 = vmul.f32 %v1553, 1.442695
      %v1590 = vpow.pop %v1589
      %v1591 = vmul.f32 %v1554, 1.442695
      %v1592 = vpow.pop %v1591
      %v1593 = vmul.f32 %v1555, 1.442695
      %v1594 = vpow.pop %v1593
      %v1595 = vmul.f32 %v1556, 1.442695
      %v1596 = vpow.pop %v1595
      %v1597 = vmul.f32 %v1557, 1.442695
      %v1598 = vpow.pop %v1597
      %v1599 = vmul.f32 %v1558, 1.442695
      %v1600 = vpow.pop %v1599
      %v1601 = vmul.f32 %v1559, 1.442695
      %v1602 = vpow.pop %v1601
      %v1603 = vmul.f32 %v1560, 1.442695
      %v1604 = vpow.pop %v1603
      %v1605 = vmul.f32 %v1561, 1.442695
      %v1606 = vpow.pop %v1605
      %v1607 = vmul.f32 %v1562, 1.442695
      %v1608 = vpow.pop %v1607
      %v1609 = vmul.f32 %v1563, 1.442695
      %v1610 = vpow.pop %v1609
      %v1611 = vmul.f32 %v1564, 1.442695
      %v1612 = vpow.pop %v1611
      %v1613 = vmul.f32 %v1565, 1.442695
      %v1614 = vpow.pop %v1613
      %v1615 = vmul.f32 %v1566, 1.442695
      %v1616 = vpow.pop %v1615
      %v1617 = vmul.f32 %v1567, 1.442695
      %v1618 = vpow.pop %v1617
      %v1619 = vmul.f32 %v1568, 1.442695
      %v1620 = vpow.pop %v1619
      %v1621 = vmul.f32 %v1569, 1.442695
      %v1622 = vpow.pop %v1621
      %v1623 = vmul.f32 %v1570, 1.442695
      %v1624 = vpow.pop %v1623
      %v1625 = vmul.f32 %v1571, 1.442695
      %v1626 = vpow.pop %v1625
      %v1627 = vmul.f32 %v1572, 1.442695
      %v1628 = vpow.pop %v1627
      %v1629 = vmul.f32 %v1573, 1.442695
      %v1630 = vpow.pop %v1629
      %v1631 = vmul.f32 %v1574, 1.442695
      %v1632 = vpow.pop %v1631
      %v1633 = vmul.f32 %v1575, 1.442695
      %v1634 = vpow.pop %v1633
      %v1635 = vmul.f32 %v1576, 1.442695
      %v1636 = vpow.pop %v1635
      %v1637 = vmul.f32 %v1577, 1.442695
      %v1638 = vpow.pop %v1637
      %v1639 = vmul.f32 %v1578, 1.442695
      %v1640 = vpow.pop %v1639
      %v1641 = vmul.f32 %v1579, 1.442695
      %v1642 = vpow.pop %v1641
      %v1643 = vmul.f32 %v1580, 1.442695
      %v1644 = vpow.pop %v1643
      %1645 = vadd.xlane.f32.xlu0 %v1582
      %v1646 = vpop.xlane.xlu0 %1645
      %1647 = vadd.xlane.f32.xlu0 %v1584
      %v1648 = vpop.xlane.xlu0 %1647
      %1649 = vadd.xlane.f32.xlu0 %v1586
      %v1650 = vpop.xlane.xlu0 %1649
      %1651 = vadd.xlane.f32.xlu0 %v1588
      %v1652 = vpop.xlane.xlu0 %1651
      %1653 = vadd.xlane.f32.xlu0 %v1590
      %v1654 = vpop.xlane.xlu0 %1653
      %1655 = vadd.xlane.f32.xlu0 %v1592
      %v1656 = vpop.xlane.xlu0 %1655
      %1657 = vadd.xlane.f32.xlu0 %v1594
      %v1658 = vpop.xlane.xlu0 %1657
      %1659 = vadd.xlane.f32.xlu0 %v1596
      %v1660 = vpop.xlane.xlu0 %1659
      %1661 = vadd.xlane.f32.xlu0 %v1598
      %v1662 = vpop.xlane.xlu0 %1661
      %1663 = vadd.xlane.f32.xlu0 %v1600
      %v1664 = vpop.xlane.xlu0 %1663
      %1665 = vadd.xlane.f32.xlu0 %v1602
      %v1666 = vpop.xlane.xlu0 %1665
      %1667 = vadd.xlane.f32.xlu0 %v1604
      %v1668 = vpop.xlane.xlu0 %1667
      %1669 = vadd.xlane.f32.xlu0 %v1606
      %v1670 = vpop.xlane.xlu0 %1669
      %1671 = vadd.xlane.f32.xlu0 %v1608
      %v1672 = vpop.xlane.xlu0 %1671
      %1673 = vadd.xlane.f32.xlu0 %v1610
      %v1674 = vpop.xlane.xlu0 %1673
      %1675 = vadd.xlane.f32.xlu0 %v1612
      %v1676 = vpop.xlane.xlu0 %1675
      %1677 = vadd.xlane.f32.xlu0 %v1614
      %v1678 = vpop.xlane.xlu0 %1677
      %1679 = vadd.xlane.f32.xlu0 %v1616
      %v1680 = vpop.xlane.xlu0 %1679
      %1681 = vadd.xlane.f32.xlu0 %v1618
      %v1682 = vpop.xlane.xlu0 %1681
      %1683 = vadd.xlane.f32.xlu0 %v1620
      %v1684 = vpop.xlane.xlu0 %1683
      %1685 = vadd.xlane.f32.xlu0 %v1622
      %v1686 = vpop.xlane.xlu0 %1685
      %1687 = vadd.xlane.f32.xlu0 %v1624
      %v1688 = vpop.xlane.xlu0 %1687
      %1689 = vadd.xlane.f32.xlu0 %v1626
      %v1690 = vpop.xlane.xlu0 %1689
      %1691 = vadd.xlane.f32.xlu0 %v1628
      %v1692 = vpop.xlane.xlu0 %1691
      %1693 = vadd.xlane.f32.xlu0 %v1630
      %v1694 = vpop.xlane.xlu0 %1693
      %1695 = vadd.xlane.f32.xlu0 %v1632
      %v1696 = vpop.xlane.xlu0 %1695
      %1697 = vadd.xlane.f32.xlu0 %v1634
      %v1698 = vpop.xlane.xlu0 %1697
      %1699 = vadd.xlane.f32.xlu0 %v1636
      %v1700 = vpop.xlane.xlu0 %1699
      %1701 = vadd.xlane.f32.xlu0 %v1638
      %v1702 = vpop.xlane.xlu0 %1701
      %1703 = vadd.xlane.f32.xlu0 %v1640
      %v1704 = vpop.xlane.xlu0 %1703
      %1705 = vadd.xlane.f32.xlu0 %v1642
      %v1706 = vpop.xlane.xlu0 %1705
      %1707 = vadd.xlane.f32.xlu0 %v1644
      %v1708 = vpop.xlane.xlu0 %1707
      %v1709 = vrcp.pop %v1646
      %v1710 = vrcp.pop %v1648
      %v1711 = vrcp.pop %v1650
      %v1712 = vrcp.pop %v1652
      %v1713 = vrcp.pop %v1654
      %v1714 = vrcp.pop %v1656
      %v1715 = vrcp.pop %v1658
      %v1716 = vrcp.pop %v1660
      %v1717 = vrcp.pop %v1662
      %v1718 = vrcp.pop %v1664
      %v1719 = vrcp.pop %v1666
      %v1720 = vrcp.pop %v1668
      %v1721 = vrcp.pop %v1670
      %v1722 = vrcp.pop %v1672
      %v1723 = vrcp.pop %v1674
      %v1724 = vrcp.pop %v1676
      %v1725 = vrcp.pop %v1678
      %v1726 = vrcp.pop %v1680
      %v1727 = vrcp.pop %v1682
      %v1728 = vrcp.pop %v1684
      %v1729 = vrcp.pop %v1686
      %v1730 = vrcp.pop %v1688
      %v1731 = vrcp.pop %v1690
      %v1732 = vrcp.pop %v1692
      %v1733 = vrcp.pop %v1694
      %v1734 = vrcp.pop %v1696
      %v1735 = vrcp.pop %v1698
      %v1736 = vrcp.pop %v1700
      %v1737 = vrcp.pop %v1702
      %v1738 = vrcp.pop %v1704
      %v1739 = vrcp.pop %v1706
      %v1740 = vrcp.pop %v1708
      %v1741 = vmul.f32 %v1582, %v1709
      %v1742 = vmul.f32 %v1584, %v1710
      %v1743 = vmul.f32 %v1586, %v1711
      %v1744 = vmul.f32 %v1588, %v1712
      %v1745 = vmul.f32 %v1590, %v1713
      %v1746 = vmul.f32 %v1592, %v1714
      %v1747 = vmul.f32 %v1594, %v1715
      %v1748 = vmul.f32 %v1596, %v1716
      %v1749 = vmul.f32 %v1598, %v1717
      %v1750 = vmul.f32 %v1600, %v1718
      %v1751 = vmul.f32 %v1602, %v1719
      %v1752 = vmul.f32 %v1604, %v1720
      %v1753 = vmul.f32 %v1606, %v1721
      %v1754 = vmul.f32 %v1608, %v1722
      %v1755 = vmul.f32 %v1610, %v1723
      %v1756 = vmul.f32 %v1612, %v1724
      %v1757 = vmul.f32 %v1614, %v1725
      %v1758 = vmul.f32 %v1616, %v1726
      %v1759 = vmul.f32 %v1618, %v1727
      %v1760 = vmul.f32 %v1620, %v1728
      %v1761 = vmul.f32 %v1622, %v1729
      %v1762 = vmul.f32 %v1624, %v1730
      %v1763 = vmul.f32 %v1626, %v1731
      %v1764 = vmul.f32 %v1628, %v1732
      %v1765 = vmul.f32 %v1630, %v1733
      %v1766 = vmul.f32 %v1632, %v1734
      %v1767 = vmul.f32 %v1634, %v1735
      %v1768 = vmul.f32 %v1636, %v1736
      %v1769 = vmul.f32 %v1638, %v1737
      %v1770 = vmul.f32 %v1640, %v1738
      %v1771 = vmul.f32 %v1642, %v1739
      %v1772 = vmul.f32 %v1644, %v1740
      %1773 = vst [vmem:[%s280] sm:$0xff] %v1741
      %1774 = vst [vmem:[%s280 + $0x8] sm:$0xff] %v1742
      %1775 = vst [vmem:[%s280 + $0x10] sm:$0xff] %v1743
      %1776 = vst [vmem:[%s280 + $0x18] sm:$0xff] %v1744
      %1777 = vst [vmem:[%s280 + $0x20] sm:$0xff] %v1745
      %1778 = vst [vmem:[%s280 + $0x28] sm:$0xff] %v1746
      %1779 = vst [vmem:[%s280 + $0x30] sm:$0xff] %v1747
      %1780 = vst [vmem:[%s280 + $0x38] sm:$0xff] %v1748
      %1781 = vst [vmem:[%s280 + $0x40] sm:$0xff] %v1749
      %1782 = vst [vmem:[%s280 + $0x48] sm:$0xff] %v1750
      %1783 = vst [vmem:[%s280 + $0x50] sm:$0xff] %v1751
      %1784 = vst [vmem:[%s280 + $0x58] sm:$0xff] %v1752
      %1785 = vst [vmem:[%s280 + $0x60] sm:$0xff] %v1753
      %1786 = vst [vmem:[%s280 + $0x68] sm:$0xff] %v1754
      %1787 = vst [vmem:[%s280 + $0x70] sm:$0xff] %v1755
      %1788 = vst [vmem:[%s280 + $0x78] sm:$0xff] %v1756
      %1789 = vst [vmem:[%s280 + $0x80] sm:$0xff] %v1757
      %1790 = vst [vmem:[%s280 + $0x88] sm:$0xff] %v1758
      %1791 = vst [vmem:[%s280 + $0x90] sm:$0xff] %v1759
      %1792 = vst [vmem:[%s280 + $0x98] sm:$0xff] %v1760
      %1793 = vst [vmem:[%s280 + $0xa0] sm:$0xff] %v1761
      %1794 = vst [vmem:[%s280 + $0xa8] sm:$0xff] %v1762
      %1795 = vst [vmem:[%s280 + $0xb0] sm:$0xff] %v1763
      %1796 = vst [vmem:[%s280 + $0xb8] sm:$0xff] %v1764
      %1797 = vst [vmem:[%s280 + $0xc0] sm:$0xff] %v1765
      %1798 = vst [vmem:[%s280 + $0xc8] sm:$0xff] %v1766
      %1799 = vst [vmem:[%s280 + $0xd0] sm:$0xff] %v1767
      %1800 = vst [vmem:[%s280 + $0xd8] sm:$0xff] %v1768
      %1801 = vst [vmem:[%s280 + $0xe0] sm:$0xff] %v1769
      %1802 = vst [vmem:[%s280 + $0xe8] sm:$0xff] %v1770
      %1803 = vst [vmem:[%s280 + $0xf0] sm:$0xff] %v1771
      %1804 = vst [vmem:[%s280 + $0xf8] sm:$0xff] %v1772
      %s1805 = smul.u32 32, %s18
      %p1806 = scmp.lt.s32.totalorder %s1805, 95
      %s1807 = scalar_select %p1806, %s1805, 95
      %s1808 = smul.addr %s1807, 8
      %s1809 = scalar_lea.vmem %s7, %s1808
      // Predicated region
      $region49: #{class_mlp_forward.1} parent=47 // pred_check
        %p1810 = pneg %p188
      $region50: #{class_mlp_forward.1} parent=47 // pred_check_branch
        %1812 = sbr.rel (%p1810) target = $region52
      $region51: #{class_mlp_forward.1} parent=47 // pred_region
        %s1813 = smul.u32 32, %s18
      $region52: #{class_mlp_forward.1} parent=47 // pred_fallthru
        _
    $region48: #{class_mlp_forward.1} parent=5 // pred_fallthru
      _
    %p1814 = scmp.le.s32.totalorder 2, %s13
    // Predicated region
    $region53: #{class_mlp_forward.1} parent=5 // pred_check
      %p1815 = pneg %p1814
    $region54: #{class_mlp_forward.1} parent=5 // pred_check_branch
      %1817 = sbr.rel (%p1815) target = $region56
    $region55: #{class_mlp_forward.1} parent=5 // pred_region
      %s1818 = ssub.s32 %s13, 2
      // Predicated region
      $region57: #{class_mlp_forward.1} parent=55 // pred_check
        %p1819 = pneg %p194
      $region58: #{class_mlp_forward.1} parent=55 // pred_check_branch
        %1821 = sbr.rel (%p1819) target = $region60
      $region59: #{class_mlp_forward.1} parent=55 // pred_region
        %s1822 = smul.u32 32, %s19
        %p1823 = scmp.lt.s32.totalorder %s1822, 95
        %s1824 = scalar_select %p1823, %s1822, 95
        %s1825 = smul.addr %s1824, 8
        %s1826 = scalar_lea.vmem %s7, %s1825
      $region60: #{class_mlp_forward.1} parent=55 // pred_fallthru
        _
    $region56: #{class_mlp_forward.1} parent=5 // pred_fallthru
      _
  $region6: #{class_mlp_forward.1} parent=0 // loop_footer
    %s17 = sadd.s32 1, %s13
  $region7: #{class_mlp_forward.1} parent=0 // loop_footer_branch
    %12 = sbr.rel target = $region3
  $region8: #{class_mlp_forward.1} parent=0 // loop_exit
    _

</llo_original>
